<compile_context>
chip_gen: v6e
topology: v6e:2x2x1
jax: 0.10.0
libtpu: 0.0.40
codegen_flags: <defaults>
</compile_context>

<pallas_src>
import functools

import jax
import jax.numpy as jnp
from jax.experimental import pallas as pl
from jax.experimental.pallas import tpu as pltpu

BN_EPS = 1e-5
LEAKY_SLOPE = 0.2


def _leaky_relu(v):
    # Single VPU op (max) instead of compare + select; valid since slope < 1.
    return jnp.maximum(v, LEAKY_SLOPE * v)


def _round_up(n, m):
    return (n + m - 1) // m * m


# ---------------------------------------------------------------------------
# Fused MLP kernel: BN (pre-folded scale/shift) + fc1..fc5 + sigmoid.
# One batch tile per grid step, everything else VMEM-resident.
# ---------------------------------------------------------------------------
def discriminator_kernel(
    x_ref, scale_ref, shift_ref,
    w1_ref, b1_ref,
    w2_ref, b2_ref,
    w3_ref, b3_ref,
    w4_ref, b4_ref,
    w5_ref, b5_ref,
    o_ref,
):
    x = x_ref[...].astype(jnp.float32)                      # (TB, D)

    # BatchNorm (folded stats + affine) + in-place LeakyReLU:
    # residual == leaky_relu(bn(x)) because the PyTorch relu is in-place.
    z = _leaky_relu(x * scale_ref[...] + shift_ref[...])
    residual = z

    # fc1 -> relu
    h = jnp.dot(z, w1_ref[...], preferred_element_type=jnp.float32) + b1_ref[...]
    h = _leaky_relu(h)

    # fc2 -> += residual -> relu
    h = jnp.dot(h, w2_ref[...], preferred_element_type=jnp.float32) + b2_ref[...]
    h = _leaky_relu(h + residual)

    # fc3 -> relu
    h = jnp.dot(h, w3_ref[...], preferred_element_type=jnp.float32) + b3_ref[...]
    h = _leaky_relu(h)

    # fc4 -> relu
    h = jnp.dot(h, w4_ref[...], preferred_element_type=jnp.float32) + b4_ref[...]
    h = _leaky_relu(h)                                      # (TB, 16)

    # fc5 (16 -> 1) as an NT matmul producing a lane-dense (1, TB) logit row.
    # w5 is zero-padded to (8, 16); only row 0 carries the real weights.
    scores = jax.lax.dot_general(
        w5_ref[...], h, (((1,), (1,)), ((), ())),
        preferred_element_type=jnp.float32)                 # (8, TB)
    logit = scores[0:1, :] + b5_ref[0]                      # (1, TB)
    o_ref[...] = jax.nn.sigmoid(logit).astype(o_ref.dtype)


def _const_spec(shape):
    # Whole-array block, same block index every grid step (stays VMEM-resident).
    return pl.BlockSpec(shape, lambda i: (0, 0))


def _vmem_limit_bytes(tile, d, stream_bytes):
    """Generous live-VMEM budget for one batch tile (capped for v7x)."""
    lane = _round_up(max(d, 100), 128)                      # widest activation row
    x_bytes = 2 * tile * d * stream_bytes                   # double-buffered x tile
    out_bytes = 2 * tile * 4                                # double-buffered (1,TB) row
    act_bytes = 6 * tile * lane * 4                         # live f32 intermediates
    w_bytes = 4 * (d * 100 + 100 * d + d * 50 + 50 * 16 + 8 * 16
                   + 100 + d + 50 + 16 + 2 * d)             # weights + scale/shift
    est = x_bytes + out_bytes + act_bytes + w_bytes
    return int(min(max(2 * est, 8 * 2 ** 20), 32 * 2 ** 20))


@functools.partial(jax.jit, static_argnames=("batch_tile", "stream_dtype"))
def discriminator_forward(x, params, *, batch_tile=512, stream_dtype=jnp.float32):
    """x: (B, num_inputs) float32. params: dict of weights (see init_params).

    stream_dtype=jnp.bfloat16 halves HBM bytes for the streamed x (recommended
    on v6e/v7x); BN stats and all matmul accumulation stay f32 either way.
    """
    B, D = x.shape

    # ---- BN statistics (training mode: whole batch, biased variance) in XLA.
    # Two-pass centered variance avoids E[x^2]-E[x]^2 cancellation; folded with
    # gamma/beta so the kernel does BN as a single FMA.
    x32 = x.astype(jnp.float32)
    mean = jnp.mean(x32, axis=0, keepdims=True)
    var = jnp.mean(jnp.square(x32 - mean), axis=0, keepdims=True)
    scale = params["gamma"] * jax.lax.rsqrt(var + BN_EPS)
    shift = params["beta"] - mean * scale

    # ---- Batch tiling: pad B to a tile multiple (no full-batch fallback).
    if B <= batch_tile:
        tile = _round_up(B, 8)                  # single tile == full padded batch
    else:
        tile = _round_up(batch_tile, 128)       # multi-tile: keep out block lane-dense
    B_pad = _round_up(B, tile)
    num_tiles = B_pad // tile

    x_stream = x.astype(stream_dtype)
    if B_pad != B:
        x_stream = jnp.pad(x_stream, ((0, B_pad - B), (0, 0)))

    # fc5 weights padded to 8 sublanes (rows 1..7 zero) for the NT matmul.
    w5p = jnp.pad(params["w5"], ((0, 7), (0, 0)))

    out_row = pl.pallas_call(
        discriminator_kernel,
        out_shape=jax.ShapeDtypeStruct((1, B_pad), jnp.float32),
        grid_spec=pltpu.PrefetchScalarGridSpec(
            num_scalar_prefetch=0,
            grid=(num_tiles,),
            in_specs=[
                pl.BlockSpec((tile, D), lambda i: (i, 0)),      # streamed x tile
                _const_spec((1, D)), _const_spec((1, D)),       # BN scale, shift
                _const_spec((D, 100)), _const_spec((1, 100)),   # fc1
                _const_spec((100, D)), _const_spec((1, D)),     # fc2
                _const_spec((D, 50)), _const_spec((1, 50)),     # fc3
                _const_spec((50, 16)), _const_spec((1, 16)),    # fc4
                _const_spec((8, 16)),                           # fc5 weight (padded)
                pl.BlockSpec(memory_space=pltpu.MemorySpace.SMEM),  # fc5 bias scalar
            ],
            out_specs=pl.BlockSpec((1, tile), lambda i: (0, i)),    # lane-dense row
        ),
        compiler_params=pltpu.CompilerParams(
            dimension_semantics=("parallel",),
            vmem_limit_bytes=_vmem_limit_bytes(
                tile, D, jnp.dtype(stream_dtype).itemsize)),
    )(x_stream, scale, shift,
      params["w1"], params["b1"], params["w2"], params["b2"],
      params["w3"], params["b3"], params["w4"], params["b4"],
      w5p, params["b5"])

    return out_row[0, :B].reshape(B, 1)


def init_params(key, num_inputs):
    """Deterministic synthetic parameter init (PyTorch-like uniform fan-in)."""
    dims = [(num_inputs, 100), (100, num_inputs), (num_inputs, 50), (50, 16)]
    params = {
        # BatchNorm1d affine params (defaults gamma=1, beta=0) — perturbed so
        # the affine path is actually exercised.
        "gamma": jnp.ones((1, num_inputs), jnp.float32) * 1.1,
        "beta": jnp.full((1, num_inputs), 0.05, jnp.float32),
    }
    for i, (fan_in, fan_out) in enumerate(dims, start=1):
        key, kw, kb = jax.random.split(key, 3)
        bound = 1.0 / float(fan_in) ** 0.5
        # Stored as (in, out) so the kernel computes x @ W + b (== torch x @ W.T + b).
        params[f"w{i}"] = jax.random.uniform(
            kw, (fan_in, fan_out), jnp.float32, -bound, bound)
        params[f"b{i}"] = jax.random.uniform(
            kb, (1, fan_out), jnp.float32, -bound, bound)
    # fc5 kept as a (1, 16) row (PyTorch layout) + scalar bias for SMEM.
    key, kw, kb = jax.random.split(key, 3)
    bound = 1.0 / 4.0
    params["w5"] = jax.random.uniform(kw, (1, 16), jnp.float32, -bound, bound)
    params["b5"] = jax.random.uniform(kb, (1,), jnp.float32, -bound, bound)
    return params


def _reference_forward(x, params, stream_dtype=jnp.float32):
    """Pure-JAX reference mirroring the (inplace-relu) PyTorch semantics."""
    lrelu = lambda v: jnp.where(v > 0, v, LEAKY_SLOPE * v)
    x32 = x.astype(jnp.float32)
    mean = jnp.mean(x32, axis=0, keepdims=True)
    var = jnp.mean((x32 - mean) ** 2, axis=0, keepdims=True)
    scale = params["gamma"] * jax.lax.rsqrt(var + BN_EPS)
    shift = params["beta"] - mean * scale
    xs = x.astype(stream_dtype).astype(jnp.float32)
    z = lrelu(xs * scale + shift)
    residual = z
    h = lrelu(z @ params["w1"] + params["b1"])
    h = h @ params["w2"] + params["b2"]
    h = lrelu(h + residual)
    h = lrelu(h @ params["w3"] + params["b3"])
    h = lrelu(h @ params["w4"] + params["b4"])
    return jax.nn.sigmoid(h @ params["w5"].T + params["b5"])


if __name__ == "__main__":
    key = jax.random.PRNGKey(0)
    num_inputs = 32

    kx, kp = jax.random.split(key)
    params = init_params(kp, num_inputs)

    # Multi-tile + batch-padding path: B=200 -> padded to 256, two 128-row tiles
    # on a "parallel" grid axis, padded rows sliced off.
    x = jax.random.normal(kx, (200, num_inputs), jnp.float32)
    out = jax.block_until_ready(discriminator_forward(x, params, batch_tile=128))
    ref = _reference_forward(x, params)
    assert out.shape == (200, 1), out.shape
    assert jnp.allclose(out, ref, atol=1e-4, rtol=1e-4), (
        f"max abs err {jnp.max(jnp.abs(out - ref))}")

    # Single-tile path (B <= batch_tile): one 64-row block, grid of 1.
    x_small = x[:64]
    out_small = jax.block_until_ready(discriminator_forward(x_small, params))
    ref_small = _reference_forward(x_small, params)
    assert out_small.shape == (64, 1), out_small.shape
    assert jnp.allclose(out_small, ref_small, atol=1e-4, rtol=1e-4), (
        f"max abs err {jnp.max(jnp.abs(out_small - ref_small))}")

    # bf16-streamed x (v6e/v7x recommendation); BN stats / matmul math stay f32.
    out_bf16 = jax.block_until_ready(
        discriminator_forward(x, params, batch_tile=128,
                              stream_dtype=jnp.bfloat16))
    ref_bf16 = _reference_forward(x, params, stream_dtype=jnp.bfloat16)
    assert out_bf16.shape == (200, 1), out_bf16.shape
    assert jnp.allclose(out_bf16, ref_bf16, atol=1e-3, rtol=1e-3), (
        f"max abs err {jnp.max(jnp.abs(out_bf16 - ref_bf16))}")

    print("KERNEL_OK")
</pallas_src>

<mosaic_0001>
module attributes {stable_mosaic.version = 11 : i64} {
  func.func @discriminator_kernel(%arg0: i32, %arg1: memref<128x32xf32, #tpu.memory_space<vmem>>, %arg2: memref<1x32xf32, #tpu.memory_space<vmem>>, %arg3: memref<1x32xf32, #tpu.memory_space<vmem>>, %arg4: memref<32x100xf32, #tpu.memory_space<vmem>>, %arg5: memref<1x100xf32, #tpu.memory_space<vmem>>, %arg6: memref<100x32xf32, #tpu.memory_space<vmem>>, %arg7: memref<1x32xf32, #tpu.memory_space<vmem>>, %arg8: memref<32x50xf32, #tpu.memory_space<vmem>>, %arg9: memref<1x50xf32, #tpu.memory_space<vmem>>, %arg10: memref<50x16xf32, #tpu.memory_space<vmem>>, %arg11: memref<1x16xf32, #tpu.memory_space<vmem>>, %arg12: memref<8x16xf32, #tpu.memory_space<vmem>>, %arg13: memref<1xf32, #tpu.memory_space<smem>>, %arg14: memref<1x128xf32, #tpu.memory_space<vmem>>) attributes {dimension_semantics = [#tpu.dimension_semantics<parallel>], iteration_bounds = array<i64: 2>, scalar_prefetch = 0 : i64, scratch_operands = 0 : i64, tpu.core_type = #tpu.core_type<tc>, window_params = [{transform_indices = @transform_0, window_bounds = array<i64: 128, 32>}, {pipeline_mode = #tpu.pipeline_mode<synchronous>, transform_indices = @transform_1, window_bounds = array<i64: 1, 32>}, {pipeline_mode = #tpu.pipeline_mode<synchronous>, transform_indices = @transform_2, window_bounds = array<i64: 1, 32>}, {pipeline_mode = #tpu.pipeline_mode<synchronous>, transform_indices = @transform_3, window_bounds = array<i64: 32, 100>}, {pipeline_mode = #tpu.pipeline_mode<synchronous>, transform_indices = @transform_4, window_bounds = array<i64: 1, 100>}, {pipeline_mode = #tpu.pipeline_mode<synchronous>, transform_indices = @transform_5, window_bounds = array<i64: 100, 32>}, {pipeline_mode = #tpu.pipeline_mode<synchronous>, transform_indices = @transform_6, window_bounds = array<i64: 1, 32>}, {pipeline_mode = #tpu.pipeline_mode<synchronous>, transform_indices = @transform_7, window_bounds = array<i64: 32, 50>}, {pipeline_mode = #tpu.pipeline_mode<synchronous>, transform_indices = @transform_8, window_bounds = array<i64: 1, 50>}, {pipeline_mode = #tpu.pipeline_mode<synchronous>, transform_indices = @transform_9, window_bounds = array<i64: 50, 16>}, {pipeline_mode = #tpu.pipeline_mode<synchronous>, transform_indices = @transform_10, window_bounds = array<i64: 1, 16>}, {pipeline_mode = #tpu.pipeline_mode<synchronous>, transform_indices = @transform_11, window_bounds = array<i64: 8, 16>}, {transform_indices = @transform_12, window_bounds = array<i64: 1>}, {transform_indices = @transform_13, window_bounds = array<i64: 1, 128>}]} {
    %c0 = arith.constant 0 : index
    %c0_0 = arith.constant 0 : index
    %0 = vector.load %arg1[%c0, %c0_0] : memref<128x32xf32, #tpu.memory_space<vmem>>, vector<128x32xf32>
    %c0_1 = arith.constant 0 : index
    %c0_2 = arith.constant 0 : index
    %1 = vector.load %arg2[%c0_1, %c0_2] : memref<1x32xf32, #tpu.memory_space<vmem>>, vector<1x32xf32>
    %2 = vector.broadcast %1 : vector<1x32xf32> to vector<128x32xf32>
    %3 = arith.mulf %0, %2 : vector<128x32xf32>
    %c0_3 = arith.constant 0 : index
    %c0_4 = arith.constant 0 : index
    %4 = vector.load %arg3[%c0_3, %c0_4] : memref<1x32xf32, #tpu.memory_space<vmem>>, vector<1x32xf32>
    %5 = vector.broadcast %4 : vector<1x32xf32> to vector<128x32xf32>
    %6 = arith.addf %3, %5 : vector<128x32xf32>
    %cst = arith.constant 2.000000e-01 : f32
    %7 = vector.broadcast %cst : f32 to vector<128x32xf32>
    %8 = arith.mulf %7, %6 : vector<128x32xf32>
    %9 = arith.maximumf %6, %8 : vector<128x32xf32>
    %c0_5 = arith.constant 0 : index
    %c0_6 = arith.constant 0 : index
    %10 = vector.load %arg4[%c0_5, %c0_6] : memref<32x100xf32, #tpu.memory_space<vmem>>, vector<32x100xf32>
    %cst_7 = arith.constant dense<0.000000e+00> : vector<128x100xf32>
    %11 = tpu.matmul %9, %10, %cst_7 {dimension_numbers = #tpu.dot_dimension_numbers<[1], [0], [0], [1], [0, 0, 1, 1], [], []>} : vector<128x32xf32>, vector<32x100xf32>, vector<128x100xf32> -> vector<128x100xf32>
    %c0_8 = arith.constant 0 : index
    %c0_9 = arith.constant 0 : index
    %12 = vector.load %arg5[%c0_8, %c0_9] : memref<1x100xf32, #tpu.memory_space<vmem>>, vector<1x100xf32>
    %13 = vector.broadcast %12 : vector<1x100xf32> to vector<128x100xf32>
    %14 = arith.addf %11, %13 : vector<128x100xf32>
    %cst_10 = arith.constant 2.000000e-01 : f32
    %15 = vector.broadcast %cst_10 : f32 to vector<128x100xf32>
    %16 = arith.mulf %15, %14 : vector<128x100xf32>
    %17 = arith.maximumf %14, %16 : vector<128x100xf32>
    %c0_11 = arith.constant 0 : index
    %c0_12 = arith.constant 0 : index
    %18 = vector.load %arg6[%c0_11, %c0_12] : memref<100x32xf32, #tpu.memory_space<vmem>>, vector<100x32xf32>
    %cst_13 = arith.constant dense<0.000000e+00> : vector<128x32xf32>
    %19 = tpu.matmul %17, %18, %cst_13 {dimension_numbers = #tpu.dot_dimension_numbers<[1], [0], [0], [1], [0, 0, 1, 1], [], []>} : vector<128x100xf32>, vector<100x32xf32>, vector<128x32xf32> -> vector<128x32xf32>
    %c0_14 = arith.constant 0 : index
    %c0_15 = arith.constant 0 : index
    %20 = vector.load %arg7[%c0_14, %c0_15] : memref<1x32xf32, #tpu.memory_space<vmem>>, vector<1x32xf32>
    %21 = vector.broadcast %20 : vector<1x32xf32> to vector<128x32xf32>
    %22 = arith.addf %19, %21 : vector<128x32xf32>
    %23 = arith.addf %22, %9 : vector<128x32xf32>
    %cst_16 = arith.constant 2.000000e-01 : f32
    %24 = vector.broadcast %cst_16 : f32 to vector<128x32xf32>
    %25 = arith.mulf %24, %23 : vector<128x32xf32>
    %26 = arith.maximumf %23, %25 : vector<128x32xf32>
    %c0_17 = arith.constant 0 : index
    %c0_18 = arith.constant 0 : index
    %27 = vector.load %arg8[%c0_17, %c0_18] : memref<32x50xf32, #tpu.memory_space<vmem>>, vector<32x50xf32>
    %cst_19 = arith.constant dense<0.000000e+00> : vector<128x50xf32>
    %28 = tpu.matmul %26, %27, %cst_19 {dimension_numbers = #tpu.dot_dimension_numbers<[1], [0], [0], [1], [0, 0, 1, 1], [], []>} : vector<128x32xf32>, vector<32x50xf32>, vector<128x50xf32> -> vector<128x50xf32>
    %c0_20 = arith.constant 0 : index
    %c0_21 = arith.constant 0 : index
    %29 = vector.load %arg9[%c0_20, %c0_21] : memref<1x50xf32, #tpu.memory_space<vmem>>, vector<1x50xf32>
    %30 = vector.broadcast %29 : vector<1x50xf32> to vector<128x50xf32>
    %31 = arith.addf %28, %30 : vector<128x50xf32>
    %cst_22 = arith.constant 2.000000e-01 : f32
    %32 = vector.broadcast %cst_22 : f32 to vector<128x50xf32>
    %33 = arith.mulf %32, %31 : vector<128x50xf32>
    %34 = arith.maximumf %31, %33 : vector<128x50xf32>
    %c0_23 = arith.constant 0 : index
    %c0_24 = arith.constant 0 : index
    %35 = vector.load %arg10[%c0_23, %c0_24] : memref<50x16xf32, #tpu.memory_space<vmem>>, vector<50x16xf32>
    %cst_25 = arith.constant dense<0.000000e+00> : vector<128x16xf32>
    %36 = tpu.matmul %34, %35, %cst_25 {dimension_numbers = #tpu.dot_dimension_numbers<[1], [0], [0], [1], [0, 0, 1, 1], [], []>} : vector<128x50xf32>, vector<50x16xf32>, vector<128x16xf32> -> vector<128x16xf32>
    %c0_26 = arith.constant 0 : index
    %c0_27 = arith.constant 0 : index
    %37 = vector.load %arg11[%c0_26, %c0_27] : memref<1x16xf32, #tpu.memory_space<vmem>>, vector<1x16xf32>
    %38 = vector.broadcast %37 : vector<1x16xf32> to vector<128x16xf32>
    %39 = arith.addf %36, %38 : vector<128x16xf32>
    %cst_28 = arith.constant 2.000000e-01 : f32
    %40 = vector.broadcast %cst_28 : f32 to vector<128x16xf32>
    %41 = arith.mulf %40, %39 : vector<128x16xf32>
    %42 = arith.maximumf %39, %41 : vector<128x16xf32>
    %c0_29 = arith.constant 0 : index
    %c0_30 = arith.constant 0 : index
    %43 = vector.load %arg12[%c0_29, %c0_30] : memref<8x16xf32, #tpu.memory_space<vmem>>, vector<8x16xf32>
    %cst_31 = arith.constant dense<0.000000e+00> : vector<8x128xf32>
    %44 = tpu.matmul %43, %42, %cst_31 {dimension_numbers = #tpu.dot_dimension_numbers<[1], [1], [0], [0], [0, 0, 1, 0], [], []>} : vector<8x16xf32>, vector<128x16xf32>, vector<8x128xf32> -> vector<8x128xf32>
    %45 = vector.extract_strided_slice %44 {offsets = [0, 0], sizes = [1, 128], strides = [1, 1]} : vector<8x128xf32> to vector<1x128xf32>
    %c0_32 = arith.constant 0 : index
    %46 = memref.load %arg13[%c0_32] : memref<1xf32, #tpu.memory_space<smem>>
    %47 = vector.broadcast %46 : f32 to vector<1x128xf32>
    %48 = arith.addf %45, %47 : vector<1x128xf32>
    %49 = arith.negf %48 : vector<1x128xf32>
    %50 = math.exp %49 : vector<1x128xf32>
    %cst_33 = arith.constant 1.000000e+00 : f32
    %51 = vector.broadcast %cst_33 : f32 to vector<1x128xf32>
    %52 = arith.addf %51, %50 : vector<1x128xf32>
    %53 = arith.divf %51, %52 : vector<1x128xf32>
    %c0_34 = arith.constant 0 : index
    %c0_35 = arith.constant 0 : index
    %54 = vector.load %arg14[%c0_34, %c0_35] : memref<1x128xf32, #tpu.memory_space<vmem>>, vector<1x128xf32>
    tpu.vector_store %arg14[%c0_34, %c0_35], %53 {strides = array<i32>} : memref<1x128xf32, #tpu.memory_space<vmem>>, vector<1x128xf32>,
    return
  }
  func.func @transform_0(%arg0: i32) -> (i32, i32) {
    %c0_i32 = arith.constant 0 : i32
    %c0_i32_0 = arith.constant 0 : i32
    return %arg0, %c0_i32 : i32, i32
  }
  func.func @transform_1(%arg0: i32) -> (i32, i32) {
    %c0_i32 = arith.constant 0 : i32
    %c0_i32_0 = arith.constant 0 : i32
    %c0_i32_1 = arith.constant 0 : i32
    return %c0_i32, %c0_i32_0 : i32, i32
  }
  func.func @transform_2(%arg0: i32) -> (i32, i32) {
    %c0_i32 = arith.constant 0 : i32
    %c0_i32_0 = arith.constant 0 : i32
    %c0_i32_1 = arith.constant 0 : i32
    return %c0_i32, %c0_i32_0 : i32, i32
  }
  func.func @transform_3(%arg0: i32) -> (i32, i32) {
    %c0_i32 = arith.constant 0 : i32
    %c0_i32_0 = arith.constant 0 : i32
    %c0_i32_1 = arith.constant 0 : i32
    return %c0_i32, %c0_i32_0 : i32, i32
  }
  func.func @transform_4(%arg0: i32) -> (i32, i32) {
    %c0_i32 = arith.constant 0 : i32
    %c0_i32_0 = arith.constant 0 : i32
    %c0_i32_1 = arith.constant 0 : i32
    return %c0_i32, %c0_i32_0 : i32, i32
  }
  func.func @transform_5(%arg0: i32) -> (i32, i32) {
    %c0_i32 = arith.constant 0 : i32
    %c0_i32_0 = arith.constant 0 : i32
    %c0_i32_1 = arith.constant 0 : i32
    return %c0_i32, %c0_i32_0 : i32, i32
  }
  func.func @transform_6(%arg0: i32) -> (i32, i32) {
    %c0_i32 = arith.constant 0 : i32
    %c0_i32_0 = arith.constant 0 : i32
    %c0_i32_1 = arith.constant 0 : i32
    return %c0_i32, %c0_i32_0 : i32, i32
  }
  func.func @transform_7(%arg0: i32) -> (i32, i32) {
    %c0_i32 = arith.constant 0 : i32
    %c0_i32_0 = arith.constant 0 : i32
    %c0_i32_1 = arith.constant 0 : i32
    return %c0_i32, %c0_i32_0 : i32, i32
  }
  func.func @transform_8(%arg0: i32) -> (i32, i32) {
    %c0_i32 = arith.constant 0 : i32
    %c0_i32_0 = arith.constant 0 : i32
    %c0_i32_1 = arith.constant 0 : i32
    return %c0_i32, %c0_i32_0 : i32, i32
  }
  func.func @transform_9(%arg0: i32) -> (i32, i32) {
    %c0_i32 = arith.constant 0 : i32
    %c0_i32_0 = arith.constant 0 : i32
    %c0_i32_1 = arith.constant 0 : i32
    return %c0_i32, %c0_i32_0 : i32, i32
  }
  func.func @transform_10(%arg0: i32) -> (i32, i32) {
    %c0_i32 = arith.constant 0 : i32
    %c0_i32_0 = arith.constant 0 : i32
    %c0_i32_1 = arith.constant 0 : i32
    return %c0_i32, %c0_i32_0 : i32, i32
  }
  func.func @transform_11(%arg0: i32) -> (i32, i32) {
    %c0_i32 = arith.constant 0 : i32
    %c0_i32_0 = arith.constant 0 : i32
    %c0_i32_1 = arith.constant 0 : i32
    return %c0_i32, %c0_i32_0 : i32, i32
  }
  func.func @transform_12(%arg0: i32) -> i32 {
    %c0_i32 = arith.constant 0 : i32
    %c0_i32_0 = arith.constant 0 : i32
    return %c0_i32 : i32
  }
  func.func @transform_13(%arg0: i32) -> (i32, i32) {
    %c0_i32 = arith.constant 0 : i32
    %c0_i32_0 = arith.constant 0 : i32
    return %c0_i32, %arg0 : i32, i32
  }
}

</mosaic_0001>

<llo_original>
// kernel: discriminator_forward.1
$region0: #{discriminator_forward.1}
  #allocation0 [shape = 'u32[]', space=smem, size = 0x4, offset = 0x4, fixed_abs, tag = 'smem constant byte address 0x4 - core index']
  #allocation1 [shape = 'u32[144,128]{1,0:T(1,128)}', space=vmem, size = 0x12000, scoped, tag = 'internal scratch']
  #allocation2 [shape = 'f32[1]{0:T(128)S(6)}', space=smem, size = 0x200, scoped, tag = 'scoped memory for discriminator_forward.1']
  %s0 = inlined_call_operand.vmem [shape: f32[256,32], index: 0, kind: input, shape index: {}]
  %s1 = inlined_call_operand.vmem [shape: f32[1,32], index: 1, kind: input, shape index: {}]
  %s2 = inlined_call_operand.vmem [shape: f32[1,32], index: 2, kind: input, shape index: {}]
  %s3 = inlined_call_operand.vmem [shape: f32[32,100], index: 3, kind: input, shape index: {}]
  %s4 = inlined_call_operand.vmem [shape: f32[1,100], index: 4, kind: input, shape index: {}]
  %s5 = inlined_call_operand.vmem [shape: f32[100,32], index: 5, kind: input, shape index: {}]
  %s6 = inlined_call_operand.vmem [shape: f32[1,32], index: 6, kind: input, shape index: {}]
  %s7 = inlined_call_operand.vmem [shape: f32[32,50], index: 7, kind: input, shape index: {}]
  %s8 = inlined_call_operand.vmem [shape: f32[1,50], index: 8, kind: input, shape index: {}]
  %s9 = inlined_call_operand.vmem [shape: f32[50,16], index: 9, kind: input, shape index: {}]
  %s10 = inlined_call_operand.vmem [shape: f32[1,16], index: 10, kind: input, shape index: {}]
  %s11 = inlined_call_operand.vmem [shape: f32[8,16], index: 11, kind: input, shape index: {}]
  %s12 = inlined_call_operand.<no memory space> [shape: f32[1], index: 12, kind: input, shape index: {}]
  %s13 = inlined_call_operand.vmem [shape: f32[1,256], index: 13, kind: output, shape index: {}]
  %s14 = sld [smem:[#allocation0]]
  $region85: #{discriminator_forward.1} parent=0
    _
  %s16 = ssub.s32 1, %s14
  %s17 = scalar_select 0, %s16, %s14
  %18 = sst [smem:[#allocation2]] %s12
  loop: start=0, step=1, limit=4
  $region2: #{discriminator_forward.1} parent=0 // loop_pre_header
    _
  $region3: #{discriminator_forward.1} parent=0 // loop_header
    %s20 = sphi 0, %s24
    %p21 = scmp.ge.s32.totalorder %s20, 4
    %s30 = sphi 0, %s32
    %s33 = sphi 0, %s30
    %s34 = sphi 0, %s33
    %s50 = sphi 0, %s34
    %s54 = sphi 0, %s54
    %s56 = sphi 0, %s54
    %s57 = sphi 0, %s56
    %s71 = sphi 0, %s57
    %s75 = sphi 0, %s75
    %s77 = sphi 0, %s75
    %s78 = sphi 0, %s77
    %s92 = sphi 0, %s78
    %s96 = sphi 0, %s96
    %s98 = sphi 0, %s96
    %s99 = sphi 0, %s98
    %s113 = sphi 0, %s99
    %s117 = sphi 0, %s117
    %s119 = sphi 0, %s117
    %s120 = sphi 0, %s119
    %s134 = sphi 0, %s120
    %s138 = sphi 0, %s138
    %s140 = sphi 0, %s138
    %s141 = sphi 0, %s140
    %s155 = sphi 0, %s141
    %s159 = sphi 0, %s159
    %s161 = sphi 0, %s159
    %s162 = sphi 0, %s161
    %s176 = sphi 0, %s162
    %s180 = sphi 0, %s180
    %s182 = sphi 0, %s180
    %s183 = sphi 0, %s182
    %s197 = sphi 0, %s183
    %s201 = sphi 0, %s201
    %s203 = sphi 0, %s201
    %s204 = sphi 0, %s203
    %s218 = sphi 0, %s204
    %s222 = sphi 0, %s222
    %s224 = sphi 0, %s222
    %s225 = sphi 0, %s224
    %s239 = sphi 0, %s225
    %s243 = sphi 0, %s243
    %s245 = sphi 0, %s243
    %s246 = sphi 0, %s245
    %s260 = sphi 0, %s246
    %s264 = sphi 0, %s264
    %s266 = sphi 0, %s264
    %s267 = sphi 0, %s266
    %s281 = sphi 0, %s267
    %s285 = sphi 0, %s285
    %s287 = sphi 0, %s285
    %s288 = sphi 0, %s287
    %s302 = sphi 0, %s288
    %s308 = sphi 0, %s310
    %s311 = sphi 0, %s308
    %s312 = sphi 0, %s311
    %s328 = sphi 0, %s312
  $region4: #{discriminator_forward.1} parent=0 // loop_header_branch
    %23 = sbr.rel (%p21) target = $region8
  $region5: #{discriminator_forward.1} parent=0 // loop_body
    %s25 = ssub.s32 %s20, 1
    %s26 = ssub.s32 %s20, 2
    %s27 = sadd.s32 %s20, 1
    %s28 = ssub.s32 %s20, %s27
    %p29 = scmp.eq.s32.totalorder %s28, 0
    %s31 = sadd.s32 %s30, 1
    %s32 = scalar_select %p29, %s30, %s31
    %p35 = pneg %p29
    %p36 = scmp.eq.s32.totalorder %s20, 1
    %p37 = por %p35, %p36
    %p38 = scmp.ne.s32.totalorder %s30, %s33
    %p39 = scmp.eq.s32.totalorder %s20, 0
    %p40 = por %p38, %p39
    %p41 = scmp.ne.s32.totalorder %s30, %s33
    %p42 = scmp.eq.s32.totalorder %s25, 1
    %p43 = por %p41, %p42
    %p44 = scmp.ne.s32.totalorder %s33, %s34
    %p45 = scmp.eq.s32.totalorder %s25, 0
    %p46 = por %p44, %p45
    %p47 = scmp.ne.s32.totalorder %s33, %s34
    %p48 = scmp.eq.s32.totalorder %s26, 1
    %p49 = por %p47, %p48
    %p51 = scmp.ne.s32.totalorder %s34, %s50
    %p52 = scmp.eq.s32.totalorder %s26, 0
    %p53 = por %p51, %p52
    %s55 = sadd.s32 %s54, 1
    %p58 = scmp.eq.s32.totalorder %s20, 1
    %p59 = scmp.ne.s32.totalorder %s54, %s56
    %p60 = scmp.eq.s32.totalorder %s20, 0
    %p61 = por %p59, %p60
    %p62 = scmp.ne.s32.totalorder %s54, %s56
    %p63 = scmp.eq.s32.totalorder %s25, 1
    %p64 = por %p62, %p63
    %p65 = scmp.ne.s32.totalorder %s56, %s57
    %p66 = scmp.eq.s32.totalorder %s25, 0
    %p67 = por %p65, %p66
    %p68 = scmp.ne.s32.totalorder %s56, %s57
    %p69 = scmp.eq.s32.totalorder %s26, 1
    %p70 = por %p68, %p69
    %p72 = scmp.ne.s32.totalorder %s57, %s71
    %p73 = scmp.eq.s32.totalorder %s26, 0
    %p74 = por %p72, %p73
    %s76 = sadd.s32 %s75, 1
    %p79 = scmp.eq.s32.totalorder %s20, 1
    %p80 = scmp.ne.s32.totalorder %s75, %s77
    %p81 = scmp.eq.s32.totalorder %s20, 0
    %p82 = por %p80, %p81
    %p83 = scmp.ne.s32.totalorder %s75, %s77
    %p84 = scmp.eq.s32.totalorder %s25, 1
    %p85 = por %p83, %p84
    %p86 = scmp.ne.s32.totalorder %s77, %s78
    %p87 = scmp.eq.s32.totalorder %s25, 0
    %p88 = por %p86, %p87
    %p89 = scmp.ne.s32.totalorder %s77, %s78
    %p90 = scmp.eq.s32.totalorder %s26, 1
    %p91 = por %p89, %p90
    %p93 = scmp.ne.s32.totalorder %s78, %s92
    %p94 = scmp.eq.s32.totalorder %s26, 0
    %p95 = por %p93, %p94
    %s97 = sadd.s32 %s96, 1
    %p100 = scmp.eq.s32.totalorder %s20, 1
    %p101 = scmp.ne.s32.totalorder %s96, %s98
    %p102 = scmp.eq.s32.totalorder %s20, 0
    %p103 = por %p101, %p102
    %p104 = scmp.ne.s32.totalorder %s96, %s98
    %p105 = scmp.eq.s32.totalorder %s25, 1
    %p106 = por %p104, %p105
    %p107 = scmp.ne.s32.totalorder %s98, %s99
    %p108 = scmp.eq.s32.totalorder %s25, 0
    %p109 = por %p107, %p108
    %p110 = scmp.ne.s32.totalorder %s98, %s99
    %p111 = scmp.eq.s32.totalorder %s26, 1
    %p112 = por %p110, %p111
    %p114 = scmp.ne.s32.totalorder %s99, %s113
    %p115 = scmp.eq.s32.totalorder %s26, 0
    %p116 = por %p114, %p115
    %s118 = sadd.s32 %s117, 1
    %p121 = scmp.eq.s32.totalorder %s20, 1
    %p122 = scmp.ne.s32.totalorder %s117, %s119
    %p123 = scmp.eq.s32.totalorder %s20, 0
    %p124 = por %p122, %p123
    %p125 = scmp.ne.s32.totalorder %s117, %s119
    %p126 = scmp.eq.s32.totalorder %s25, 1
    %p127 = por %p125, %p126
    %p128 = scmp.ne.s32.totalorder %s119, %s120
    %p129 = scmp.eq.s32.totalorder %s25, 0
    %p130 = por %p128, %p129
    %p131 = scmp.ne.s32.totalorder %s119, %s120
    %p132 = scmp.eq.s32.totalorder %s26, 1
    %p133 = por %p131, %p132
    %p135 = scmp.ne.s32.totalorder %s120, %s134
    %p136 = scmp.eq.s32.totalorder %s26, 0
    %p137 = por %p135, %p136
    %s139 = sadd.s32 %s138, 1
    %p142 = scmp.eq.s32.totalorder %s20, 1
    %p143 = scmp.ne.s32.totalorder %s138, %s140
    %p144 = scmp.eq.s32.totalorder %s20, 0
    %p145 = por %p143, %p144
    %p146 = scmp.ne.s32.totalorder %s138, %s140
    %p147 = scmp.eq.s32.totalorder %s25, 1
    %p148 = por %p146, %p147
    %p149 = scmp.ne.s32.totalorder %s140, %s141
    %p150 = scmp.eq.s32.totalorder %s25, 0
    %p151 = por %p149, %p150
    %p152 = scmp.ne.s32.totalorder %s140, %s141
    %p153 = scmp.eq.s32.totalorder %s26, 1
    %p154 = por %p152, %p153
    %p156 = scmp.ne.s32.totalorder %s141, %s155
    %p157 = scmp.eq.s32.totalorder %s26, 0
    %p158 = por %p156, %p157
    %s160 = sadd.s32 %s159, 1
    %p163 = scmp.eq.s32.totalorder %s20, 1
    %p164 = scmp.ne.s32.totalorder %s159, %s161
    %p165 = scmp.eq.s32.totalorder %s20, 0
    %p166 = por %p164, %p165
    %p167 = scmp.ne.s32.totalorder %s159, %s161
    %p168 = scmp.eq.s32.totalorder %s25, 1
    %p169 = por %p167, %p168
    %p170 = scmp.ne.s32.totalorder %s161, %s162
    %p171 = scmp.eq.s32.totalorder %s25, 0
    %p172 = por %p170, %p171
    %p173 = scmp.ne.s32.totalorder %s161, %s162
    %p174 = scmp.eq.s32.totalorder %s26, 1
    %p175 = por %p173, %p174
    %p177 = scmp.ne.s32.totalorder %s162, %s176
    %p178 = scmp.eq.s32.totalorder %s26, 0
    %p179 = por %p177, %p178
    %s181 = sadd.s32 %s180, 1
    %p184 = scmp.eq.s32.totalorder %s20, 1
    %p185 = scmp.ne.s32.totalorder %s180, %s182
    %p186 = scmp.eq.s32.totalorder %s20, 0
    %p187 = por %p185, %p186
    %p188 = scmp.ne.s32.totalorder %s180, %s182
    %p189 = scmp.eq.s32.totalorder %s25, 1
    %p190 = por %p188, %p189
    %p191 = scmp.ne.s32.totalorder %s182, %s183
    %p192 = scmp.eq.s32.totalorder %s25, 0
    %p193 = por %p191, %p192
    %p194 = scmp.ne.s32.totalorder %s182, %s183
    %p195 = scmp.eq.s32.totalorder %s26, 1
    %p196 = por %p194, %p195
    %p198 = scmp.ne.s32.totalorder %s183, %s197
    %p199 = scmp.eq.s32.totalorder %s26, 0
    %p200 = por %p198, %p199
    %s202 = sadd.s32 %s201, 1
    %p205 = scmp.eq.s32.totalorder %s20, 1
    %p206 = scmp.ne.s32.totalorder %s201, %s203
    %p207 = scmp.eq.s32.totalorder %s20, 0
    %p208 = por %p206, %p207
    %p209 = scmp.ne.s32.totalorder %s201, %s203
    %p210 = scmp.eq.s32.totalorder %s25, 1
    %p211 = por %p209, %p210
    %p212 = scmp.ne.s32.totalorder %s203, %s204
    %p213 = scmp.eq.s32.totalorder %s25, 0
    %p214 = por %p212, %p213
    %p215 = scmp.ne.s32.totalorder %s203, %s204
    %p216 = scmp.eq.s32.totalorder %s26, 1
    %p217 = por %p215, %p216
    %p219 = scmp.ne.s32.totalorder %s204, %s218
    %p220 = scmp.eq.s32.totalorder %s26, 0
    %p221 = por %p219, %p220
    %s223 = sadd.s32 %s222, 1
    %p226 = scmp.eq.s32.totalorder %s20, 1
    %p227 = scmp.ne.s32.totalorder %s222, %s224
    %p228 = scmp.eq.s32.totalorder %s20, 0
    %p229 = por %p227, %p228
    %p230 = scmp.ne.s32.totalorder %s222, %s224
    %p231 = scmp.eq.s32.totalorder %s25, 1
    %p232 = por %p230, %p231
    %p233 = scmp.ne.s32.totalorder %s224, %s225
    %p234 = scmp.eq.s32.totalorder %s25, 0
    %p235 = por %p233, %p234
    %p236 = scmp.ne.s32.totalorder %s224, %s225
    %p237 = scmp.eq.s32.totalorder %s26, 1
    %p238 = por %p236, %p237
    %p240 = scmp.ne.s32.totalorder %s225, %s239
    %p241 = scmp.eq.s32.totalorder %s26, 0
    %p242 = por %p240, %p241
    %s244 = sadd.s32 %s243, 1
    %p247 = scmp.eq.s32.totalorder %s20, 1
    %p248 = scmp.ne.s32.totalorder %s243, %s245
    %p249 = scmp.eq.s32.totalorder %s20, 0
    %p250 = por %p248, %p249
    %p251 = scmp.ne.s32.totalorder %s243, %s245
    %p252 = scmp.eq.s32.totalorder %s25, 1
    %p253 = por %p251, %p252
    %p254 = scmp.ne.s32.totalorder %s245, %s246
    %p255 = scmp.eq.s32.totalorder %s25, 0
    %p256 = por %p254, %p255
    %p257 = scmp.ne.s32.totalorder %s245, %s246
    %p258 = scmp.eq.s32.totalorder %s26, 1
    %p259 = por %p257, %p258
    %p261 = scmp.ne.s32.totalorder %s246, %s260
    %p262 = scmp.eq.s32.totalorder %s26, 0
    %p263 = por %p261, %p262
    %s265 = sadd.s32 %s264, 1
    %p268 = scmp.eq.s32.totalorder %s20, 1
    %p269 = scmp.ne.s32.totalorder %s264, %s266
    %p270 = scmp.eq.s32.totalorder %s20, 0
    %p271 = por %p269, %p270
    %p272 = scmp.ne.s32.totalorder %s264, %s266
    %p273 = scmp.eq.s32.totalorder %s25, 1
    %p274 = por %p272, %p273
    %p275 = scmp.ne.s32.totalorder %s266, %s267
    %p276 = scmp.eq.s32.totalorder %s25, 0
    %p277 = por %p275, %p276
    %p278 = scmp.ne.s32.totalorder %s266, %s267
    %p279 = scmp.eq.s32.totalorder %s26, 1
    %p280 = por %p278, %p279
    %p282 = scmp.ne.s32.totalorder %s267, %s281
    %p283 = scmp.eq.s32.totalorder %s26, 0
    %p284 = por %p282, %p283
    %s286 = sadd.s32 %s285, 1
    %p289 = scmp.eq.s32.totalorder %s20, 1
    %p290 = scmp.ne.s32.totalorder %s285, %s287
    %p291 = scmp.eq.s32.totalorder %s20, 0
    %p292 = por %p290, %p291
    %p293 = scmp.ne.s32.totalorder %s285, %s287
    %p294 = scmp.eq.s32.totalorder %s25, 1
    %p295 = por %p293, %p294
    %p296 = scmp.ne.s32.totalorder %s287, %s288
    %p297 = scmp.eq.s32.totalorder %s25, 0
    %p298 = por %p296, %p297
    %p299 = scmp.ne.s32.totalorder %s287, %s288
    %p300 = scmp.eq.s32.totalorder %s26, 1
    %p301 = por %p299, %p300
    %p303 = scmp.ne.s32.totalorder %s288, %s302
    %p304 = scmp.eq.s32.totalorder %s26, 0
    %p305 = por %p303, %p304
    %s306 = ssub.s32 %s20, %s27
    %p307 = scmp.eq.s32.totalorder %s306, 0
    %s309 = sadd.s32 %s308, 1
    %s310 = scalar_select %p307, %s308, %s309
    %p313 = pneg %p307
    %p314 = scmp.eq.s32.totalorder %s20, 1
    %p315 = por %p313, %p314
    %p316 = scmp.ne.s32.totalorder %s308, %s311
    %p317 = scmp.eq.s32.totalorder %s20, 0
    %p318 = por %p316, %p317
    %p319 = scmp.ne.s32.totalorder %s308, %s311
    %p320 = scmp.eq.s32.totalorder %s25, 1
    %p321 = por %p319, %p320
    %p322 = scmp.ne.s32.totalorder %s311, %s312
    %p323 = scmp.eq.s32.totalorder %s25, 0
    %p324 = por %p322, %p323
    %p325 = scmp.ne.s32.totalorder %s311, %s312
    %p326 = scmp.eq.s32.totalorder %s26, 1
    %p327 = por %p325, %p326
    %p329 = scmp.ne.s32.totalorder %s312, %s328
    %p330 = scmp.eq.s32.totalorder %s26, 0
    %p331 = por %p329, %p330
    %p332 = scmp.le.s32.totalorder 1, %s20
    %p333 = scmp.lt.s32.totalorder %s20, 3
    %p334 = pnand %p332, %p333
    %p335 = pneg %p334
    // Predicated region
    $region9: #{discriminator_forward.1} parent=5 // pred_check
      _
    $region10: #{discriminator_forward.1} parent=5 // pred_check_branch
      %337 = sbr.rel (%p334) target = $region12
    $region11: #{discriminator_forward.1} parent=5 // pred_region
      %s338 = ssub.s32 %s20, 1
      // Predicated region
      $region13: #{discriminator_forward.1} parent=11 // pred_check
        %p339 = pneg %p67
      $region14: #{discriminator_forward.1} parent=11 // pred_check_branch
        %341 = sbr.rel (%p339) target = $region16
      $region15: #{discriminator_forward.1} parent=11 // pred_region
        _
      $region16: #{discriminator_forward.1} parent=11 // pred_fallthru
        _
      // Predicated region
      $region17: #{discriminator_forward.1} parent=11 // pred_check
        %p342 = pneg %p88
      $region18: #{discriminator_forward.1} parent=11 // pred_check_branch
        %344 = sbr.rel (%p342) target = $region20
      $region19: #{discriminator_forward.1} parent=11 // pred_region
        _
      $region20: #{discriminator_forward.1} parent=11 // pred_fallthru
        _
      // Predicated region
      $region21: #{discriminator_forward.1} parent=11 // pred_check
        %p345 = pneg %p109
      $region22: #{discriminator_forward.1} parent=11 // pred_check_branch
        %347 = sbr.rel (%p345) target = $region24
      $region23: #{discriminator_forward.1} parent=11 // pred_region
        _
      $region24: #{discriminator_forward.1} parent=11 // pred_fallthru
        _
      // Predicated region
      $region25: #{discriminator_forward.1} parent=11 // pred_check
        %p348 = pneg %p130
      $region26: #{discriminator_forward.1} parent=11 // pred_check_branch
        %350 = sbr.rel (%p348) target = $region28
      $region27: #{discriminator_forward.1} parent=11 // pred_region
        _
      $region28: #{discriminator_forward.1} parent=11 // pred_fallthru
        _
      // Predicated region
      $region29: #{discriminator_forward.1} parent=11 // pred_check
        %p351 = pneg %p151
      $region30: #{discriminator_forward.1} parent=11 // pred_check_branch
        %353 = sbr.rel (%p351) target = $region32
      $region31: #{discriminator_forward.1} parent=11 // pred_region
        _
      $region32: #{discriminator_forward.1} parent=11 // pred_fallthru
        _
      // Predicated region
      $region33: #{discriminator_forward.1} parent=11 // pred_check
        %p354 = pneg %p172
      $region34: #{discriminator_forward.1} parent=11 // pred_check_branch
        %356 = sbr.rel (%p354) target = $region36
      $region35: #{discriminator_forward.1} parent=11 // pred_region
        _
      $region36: #{discriminator_forward.1} parent=11 // pred_fallthru
        _
      // Predicated region
      $region37: #{discriminator_forward.1} parent=11 // pred_check
        %p357 = pneg %p193
      $region38: #{discriminator_forward.1} parent=11 // pred_check_branch
        %359 = sbr.rel (%p357) target = $region40
      $region39: #{discriminator_forward.1} parent=11 // pred_region
        _
      $region40: #{discriminator_forward.1} parent=11 // pred_fallthru
        _
      // Predicated region
      $region41: #{discriminator_forward.1} parent=11 // pred_check
        %p360 = pneg %p214
      $region42: #{discriminator_forward.1} parent=11 // pred_check_branch
        %362 = sbr.rel (%p360) target = $region44
      $region43: #{discriminator_forward.1} parent=11 // pred_region
        _
      $region44: #{discriminator_forward.1} parent=11 // pred_fallthru
        _
      // Predicated region
      $region45: #{discriminator_forward.1} parent=11 // pred_check
        %p363 = pneg %p235
      $region46: #{discriminator_forward.1} parent=11 // pred_check_branch
        %365 = sbr.rel (%p363) target = $region48
      $region47: #{discriminator_forward.1} parent=11 // pred_region
        _
      $region48: #{discriminator_forward.1} parent=11 // pred_fallthru
        _
      // Predicated region
      $region49: #{discriminator_forward.1} parent=11 // pred_check
        %p366 = pneg %p256
      $region50: #{discriminator_forward.1} parent=11 // pred_check_branch
        %368 = sbr.rel (%p366) target = $region52
      $region51: #{discriminator_forward.1} parent=11 // pred_region
        _
      $region52: #{discriminator_forward.1} parent=11 // pred_fallthru
        _
      // Predicated region
      $region53: #{discriminator_forward.1} parent=11 // pred_check
        %p369 = pneg %p277
      $region54: #{discriminator_forward.1} parent=11 // pred_check_branch
        %371 = sbr.rel (%p369) target = $region56
      $region55: #{discriminator_forward.1} parent=11 // pred_region
        _
      $region56: #{discriminator_forward.1} parent=11 // pred_fallthru
        _
      // Predicated region
      $region57: #{discriminator_forward.1} parent=11 // pred_check
        %p372 = pneg %p298
      $region58: #{discriminator_forward.1} parent=11 // pred_check_branch
        %374 = sbr.rel (%p372) target = $region60
      $region59: #{discriminator_forward.1} parent=11 // pred_region
        _
      $region60: #{discriminator_forward.1} parent=11 // pred_fallthru
        _
    $region12: #{discriminator_forward.1} parent=5 // pred_fallthru
      _
    %p375 = scmp.lt.s32.totalorder %s20, 2
    // Predicated region
    $region61: #{discriminator_forward.1} parent=5 // pred_check
      %p376 = pneg %p375
    $region62: #{discriminator_forward.1} parent=5 // pred_check_branch
      %378 = sbr.rel (%p376) target = $region64
    $region63: #{discriminator_forward.1} parent=5 // pred_region
      // Predicated region
      $region65: #{discriminator_forward.1} parent=63 // pred_check
        %p379 = pneg %p40
      $region66: #{discriminator_forward.1} parent=63 // pred_check_branch
        %381 = sbr.rel (%p379) target = $region68
      $region67: #{discriminator_forward.1} parent=63 // pred_region
        %s382 = smul.u32 16, %s20
        %p383 = scmp.lt.s32.totalorder %s382, 31
        %s384 = scalar_select %p383, %s382, 31
        %s385 = smul.addr %s384, 8
        %s386 = scalar_lea.vmem %s0, %s385
        %s387 = smul.u32 16, %s20
      $region68: #{discriminator_forward.1} parent=63 // pred_fallthru
        _
    $region64: #{discriminator_forward.1} parent=5 // pred_fallthru
      _
    %p388 = scmp.le.s32.totalorder 1, %s20
    %p389 = scmp.lt.s32.totalorder %s20, 3
    %p390 = pnand %p388, %p389
    %p391 = pneg %p390
    // Predicated region
    $region69: #{discriminator_forward.1} parent=5 // pred_check
      _
    $region70: #{discriminator_forward.1} parent=5 // pred_check_branch
      %393 = sbr.rel (%p390) target = $region72
    $region71: #{discriminator_forward.1} parent=5 // pred_region
      %s394 = ssub.s32 %s20, 1
      %s395 = smul.u32 16, %s25
      %p396 = scmp.lt.s32.totalorder %s395, 31
      %s397 = scalar_select %p396, %s395, 31
      %s398 = smul.addr %s397, 8
      %s399 = scalar_lea.vmem %s0, %s398
      %p400 = pneg %p46
      %p401 = pneg %p43
      %p402 = pneg %p67
      %p403 = pneg %p64
      %p404 = pneg %p88
      %p405 = pneg %p85
      %p406 = pneg %p109
      %p407 = pneg %p106
      %p408 = pneg %p130
      %p409 = pneg %p127
      %p410 = pneg %p151
      %p411 = pneg %p148
      %p412 = pneg %p172
      %p413 = pneg %p169
      %p414 = pneg %p193
      %p415 = pneg %p190
      %p416 = pneg %p214
      %p417 = pneg %p211
      %p418 = pneg %p235
      %p419 = pneg %p232
      %p420 = pneg %p256
      %p421 = pneg %p253
      %p422 = pneg %p277
      %p423 = pneg %p274
      %p424 = pneg %p298
      %p425 = pneg %p295
      %p426 = pneg %p324
      %p427 = pneg %p321
      %p428 = scmp.lt.s32.totalorder %s25, 1
      %s429 = scalar_select %p428, %s25, 1
      %s430 = scalar_lea.vmem %s13, %s429
      %s431 = smul.u32 16, %s25
      %p432 = scmp.lt.s32.totalorder %s431, 31
      %s433 = scalar_select %p432, %s431, 31
      %s434 = smul.addr %s433, 8
      %s435 = scalar_lea.vmem %s0, %s434
      %s436 = smul.u32 16, %s25
      %p437 = scmp.lt.s32.totalorder %s25, 1
      %s438 = scalar_select %p437, %s25, 1
      %s439 = scalar_lea.vmem %s13, %s438
      %v440 = vld [vmem:[%s435] sm:$0xff]
      %v441 = vld [vmem:[%s435 + $0x8] sm:$0xff]
      %v442 = vld [vmem:[%s435 + $0x10] sm:$0xff]
      %v443 = vld [vmem:[%s435 + $0x18] sm:$0xff]
      %v444 = vld [vmem:[%s435 + $0x20] sm:$0xff]
      %v445 = vld [vmem:[%s435 + $0x28] sm:$0xff]
      %v446 = vld [vmem:[%s435 + $0x30] sm:$0xff]
      %v447 = vld [vmem:[%s435 + $0x38] sm:$0xff]
      %v448 = vld [vmem:[%s435 + $0x40] sm:$0xff]
      %v449 = vld [vmem:[%s435 + $0x48] sm:$0xff]
      %v450 = vld [vmem:[%s435 + $0x50] sm:$0xff]
      %v451 = vld [vmem:[%s435 + $0x58] sm:$0xff]
      %v452 = vld [vmem:[%s435 + $0x60] sm:$0xff]
      %v453 = vld [vmem:[%s435 + $0x68] sm:$0xff]
      %v454 = vld [vmem:[%s435 + $0x70] sm:$0xff]
      %v455 = vld [vmem:[%s435 + $0x78] sm:$0xff]
      %v456 = vld [vmem:[%s1] sm:$0x1]
      %v458 = vlaneseq
      %v459 = vshrl.u32 %v458, 7
      %v460 = vsub.s32 0, %v459
      %v461 = vrot.slane %v456, %v460
      %v463 = vmul.f32 %v440, %v461
      %v464 = vmul.f32 %v441, %v461
      %v465 = vmul.f32 %v442, %v461
      %v466 = vmul.f32 %v443, %v461
      %v467 = vmul.f32 %v444, %v461
      %v468 = vmul.f32 %v445, %v461
      %v469 = vmul.f32 %v446, %v461
      %v470 = vmul.f32 %v447, %v461
      %v471 = vmul.f32 %v448, %v461
      %v472 = vmul.f32 %v449, %v461
      %v473 = vmul.f32 %v450, %v461
      %v474 = vmul.f32 %v451, %v461
      %v475 = vmul.f32 %v452, %v461
      %v476 = vmul.f32 %v453, %v461
      %v477 = vmul.f32 %v454, %v461
      %v478 = vmul.f32 %v455, %v461
      %v479 = vld [vmem:[%s2] sm:$0x1]
      %v481 = vlaneseq
      %v482 = vshrl.u32 %v481, 7
      %v483 = vsub.s32 0, %v482
      %v484 = vrot.slane %v479, %v483
      %v486 = vadd.f32 %v463, %v484
      %v487 = vadd.f32 %v464, %v484
      %v488 = vadd.f32 %v465, %v484
      %v489 = vadd.f32 %v466, %v484
      %v490 = vadd.f32 %v467, %v484
      %v491 = vadd.f32 %v468, %v484
      %v492 = vadd.f32 %v469, %v484
      %v493 = vadd.f32 %v470, %v484
      %v494 = vadd.f32 %v471, %v484
      %v495 = vadd.f32 %v472, %v484
      %v496 = vadd.f32 %v473, %v484
      %v497 = vadd.f32 %v474, %v484
      %v498 = vadd.f32 %v475, %v484
      %v499 = vadd.f32 %v476, %v484
      %v500 = vadd.f32 %v477, %v484
      %v501 = vadd.f32 %v478, %v484
      %v502 = vmul.f32 %v486, 0.2
      %v503 = vmul.f32 %v487, 0.2
      %v504 = vmul.f32 %v488, 0.2
      %v505 = vmul.f32 %v489, 0.2
      %v506 = vmul.f32 %v490, 0.2
      %v507 = vmul.f32 %v491, 0.2
      %v508 = vmul.f32 %v492, 0.2
      %v509 = vmul.f32 %v493, 0.2
      %v510 = vmul.f32 %v494, 0.2
      %v511 = vmul.f32 %v495, 0.2
      %v512 = vmul.f32 %v496, 0.2
      %v513 = vmul.f32 %v497, 0.2
      %v514 = vmul.f32 %v498, 0.2
      %v515 = vmul.f32 %v499, 0.2
      %v516 = vmul.f32 %v500, 0.2
      %v517 = vmul.f32 %v501, 0.2
      %v518 = vmax.f32 %v486, %v502
      %v519 = vmax.f32 %v487, %v503
      %v520 = vmax.f32 %v488, %v504
      %v521 = vmax.f32 %v489, %v505
      %v522 = vmax.f32 %v490, %v506
      %v523 = vmax.f32 %v491, %v507
      %v524 = vmax.f32 %v492, %v508
      %v525 = vmax.f32 %v493, %v509
      %v526 = vmax.f32 %v494, %v510
      %v527 = vmax.f32 %v495, %v511
      %v528 = vmax.f32 %v496, %v512
      %v529 = vmax.f32 %v497, %v513
      %v530 = vmax.f32 %v498, %v514
      %v531 = vmax.f32 %v499, %v515
      %v532 = vmax.f32 %v500, %v516
      %v533 = vmax.f32 %v501, %v517
      %v534 = vld [vmem:[%s3] sm:$0xff]
      %v535 = vld [vmem:[%s3 + $0x8] sm:$0xff]
      %v536 = vld [vmem:[%s3 + $0x10] sm:$0xff]
      %v537 = vld [vmem:[%s3 + $0x18] sm:$0xff]
      %v538 = vld [vmem:[%s4] sm:$0x1]
      %v540 = vlaneseq
      %v541 = vshrl.u32 %v540, 7
      %v542 = vsub.s32 0, %v541
      %v543 = vrot.slane %v538, %v542
      %vm545 = vcmask 261120
      %v547 = vsel %vm545, %v518, 0
      %v550 = vsel %vm545, %v519, 0
      %v553 = vsel %vm545, %v520, 0
      %v556 = vsel %vm545, %v521, 0
      %v559 = vsel %vm545, %v522, 0
      %v562 = vsel %vm545, %v523, 0
      %v565 = vsel %vm545, %v524, 0
      %v568 = vsel %vm545, %v525, 0
      %v571 = vsel %vm545, %v526, 0
      %v574 = vsel %vm545, %v527, 0
      %v577 = vsel %vm545, %v528, 0
      %v580 = vsel %vm545, %v529, 0
      %v583 = vsel %vm545, %v530, 0
      %v586 = vsel %vm545, %v531, 0
      %v589 = vsel %vm545, %v532, 0
      %v592 = vsel %vm545, %v533, 0
      %594 = vmatprep.subr.mxu0 0.0
      %595 = vmatpush1.msra.mxu0 0.0
      %596 = vmatprep.subr.mxu0 0.0
      %597 = vmatpush1.msra.mxu0 0.0
      %598 = vmatprep.subr.mxu0 0.0
      %599 = vmatpush1.msra.mxu0 0.0
      %600 = vmatprep.subr.mxu0 0.0
      %601 = vmatpush1.msra.mxu0 0.0
      %602 = vmatprep.subr.mxu0 0.0
      %603 = vmatpush1.msra.mxu0 0.0
      %604 = vmatprep.subr.mxu0 0.0
      %605 = vmatpush1.msra.mxu0 0.0
      %606 = vmatprep.subr.mxu0 0.0
      %607 = vmatpush1.msra.mxu0 0.0
      %608 = vmatprep.subr.mxu0 0.0
      %609 = vmatpush1.msra.mxu0 0.0
      %610 = vmatprep.subr.mxu0 0.0
      %611 = vmatpush1.msra.mxu0 0.0
      %612 = vmatprep.subr.mxu0 0.0
      %613 = vmatpush1.msra.mxu0 0.0
      %614 = vmatprep.subr.mxu0 0.0
      %615 = vmatpush1.msra.mxu0 0.0
      %616 = vmatprep.subr.mxu0 0.0
      %617 = vmatpush1.msra.mxu0 0.0
      %618 = vmatprep.subr.mxu0 0.0
      %619 = vmatpush1.msra.mxu0 %v537
      %620 = vmatprep.subr.mxu0 0.0
      %621 = vmatpush1.msra.mxu0 %v536
      %622 = vmatprep.subr.mxu0 0.0
      %623 = vmatpush1.msra.mxu0 %v535
      %624 = vmatprep.subr.mxu0 0.0
      %625 = vmatpush1.msra.mxu0 %v534
      %626 = vmatprep.subr.mxu0 0.0
      %627 = vmatpush2.msra.mxu0 0.0
      %628 = vmatprep.subr.mxu0 0.0
      %629 = vmatpush2.msra.mxu0 0.0
      %630 = vmatprep.subr.mxu0 0.0
      %631 = vmatpush2.msra.mxu0 0.0
      %632 = vmatprep.subr.mxu0 0.0
      %633 = vmatpush2.msra.mxu0 0.0
      %634 = vmatprep.subr.mxu0 0.0
      %635 = vmatpush2.msra.mxu0 0.0
      %636 = vmatprep.subr.mxu0 0.0
      %637 = vmatpush2.msra.mxu0 0.0
      %638 = vmatprep.subr.mxu0 0.0
      %639 = vmatpush2.msra.mxu0 0.0
      %640 = vmatprep.subr.mxu0 0.0
      %641 = vmatpush2.msra.mxu0 0.0
      %642 = vmatprep.subr.mxu0 0.0
      %643 = vmatpush2.msra.mxu0 0.0
      %644 = vmatprep.subr.mxu0 0.0
      %645 = vmatpush2.msra.mxu0 0.0
      %646 = vmatprep.subr.mxu0 0.0
      %647 = vmatpush2.msra.mxu0 0.0
      %648 = vmatprep.subr.mxu0 0.0
      %649 = vmatpush2.msra.mxu0 0.0
      %650 = vmatprep.subr.mxu0 0.0
      %651 = vmatpush2.msra.mxu0 0.0
      %652 = vmatprep.subr.mxu0 0.0
      %653 = vmatpush2.msra.mxu0 0.0
      %654 = vmatprep.subr.mxu0 0.0
      %655 = vmatpush2.msra.mxu0 0.0
      %656 = vmatprep.subr.mxu0 0.0
      %657 = vmatpush2.msra.mxu0 0.0
      %658 = vmatprep.mubr.f32.mxu0 0.0
      %659 = vmatmul.mubr.f32.gmra.mxu0 %v547
      %v660 = vpop.f32.mrf.mxu0
      %v661 = vadd.f32 %v543, %v660
      %v662 = vpop.f32.mrf.mxu0
      %663 = vmatprep.mubr.f32.mxu0 0.0
      %664 = vmatmul.mubr.f32.gmra.mxu0 %v550
      %v665 = vpop.f32.mrf.mxu0
      %v666 = vadd.f32 %v543, %v665
      %v667 = vpop.f32.mrf.mxu0
      %668 = vmatprep.mubr.f32.mxu0 0.0
      %669 = vmatmul.mubr.f32.gmra.mxu0 %v553
      %v670 = vpop.f32.mrf.mxu0
      %v671 = vadd.f32 %v543, %v670
      %v672 = vpop.f32.mrf.mxu0
      %673 = vmatprep.mubr.f32.mxu0 0.0
      %674 = vmatmul.mubr.f32.gmra.mxu0 %v556
      %v675 = vpop.f32.mrf.mxu0
      %v676 = vadd.f32 %v543, %v675
      %v677 = vpop.f32.mrf.mxu0
      %678 = vmatprep.mubr.f32.mxu0 0.0
      %679 = vmatmul.mubr.f32.gmra.mxu0 %v559
      %v680 = vpop.f32.mrf.mxu0
      %v681 = vadd.f32 %v543, %v680
      %v682 = vpop.f32.mrf.mxu0
      %683 = vmatprep.mubr.f32.mxu0 0.0
      %684 = vmatmul.mubr.f32.gmra.mxu0 %v562
      %v685 = vpop.f32.mrf.mxu0
      %v686 = vadd.f32 %v543, %v685
      %v687 = vpop.f32.mrf.mxu0
      %688 = vmatprep.mubr.f32.mxu0 0.0
      %689 = vmatmul.mubr.f32.gmra.mxu0 %v565
      %v690 = vpop.f32.mrf.mxu0
      %v691 = vadd.f32 %v543, %v690
      %v692 = vpop.f32.mrf.mxu0
      %693 = vmatprep.mubr.f32.mxu0 0.0
      %694 = vmatmul.mubr.f32.gmra.mxu0 %v568
      %v695 = vpop.f32.mrf.mxu0
      %v696 = vadd.f32 %v543, %v695
      %v697 = vpop.f32.mrf.mxu0
      %698 = vmatprep.mubr.f32.mxu0 0.0
      %699 = vmatmul.mubr.f32.gmra.mxu0 %v571
      %v700 = vpop.f32.mrf.mxu0
      %v701 = vadd.f32 %v543, %v700
      %v702 = vpop.f32.mrf.mxu0
      %703 = vmatprep.mubr.f32.mxu0 0.0
      %704 = vmatmul.mubr.f32.gmra.mxu0 %v574
      %v705 = vpop.f32.mrf.mxu0
      %v706 = vadd.f32 %v543, %v705
      %v707 = vpop.f32.mrf.mxu0
      %708 = vmatprep.mubr.f32.mxu0 0.0
      %709 = vmatmul.mubr.f32.gmra.mxu0 %v577
      %v710 = vpop.f32.mrf.mxu0
      %v711 = vadd.f32 %v543, %v710
      %v712 = vpop.f32.mrf.mxu0
      %713 = vmatprep.mubr.f32.mxu0 0.0
      %714 = vmatmul.mubr.f32.gmra.mxu0 %v580
      %v715 = vpop.f32.mrf.mxu0
      %v716 = vadd.f32 %v543, %v715
      %v717 = vpop.f32.mrf.mxu0
      %718 = vmatprep.mubr.f32.mxu0 0.0
      %719 = vmatmul.mubr.f32.gmra.mxu0 %v583
      %v720 = vpop.f32.mrf.mxu0
      %v721 = vadd.f32 %v543, %v720
      %v722 = vpop.f32.mrf.mxu0
      %723 = vmatprep.mubr.f32.mxu0 0.0
      %724 = vmatmul.mubr.f32.gmra.mxu0 %v586
      %v725 = vpop.f32.mrf.mxu0
      %v726 = vadd.f32 %v543, %v725
      %v727 = vpop.f32.mrf.mxu0
      %728 = vmatprep.mubr.f32.mxu0 0.0
      %729 = vmatmul.mubr.f32.gmra.mxu0 %v589
      %v730 = vpop.f32.mrf.mxu0
      %v731 = vadd.f32 %v543, %v730
      %v732 = vpop.f32.mrf.mxu0
      %733 = vmatprep.mubr.f32.mxu0 0.0
      %734 = vmatmul.mubr.f32.gmra.mxu0 %v592
      %v735 = vpop.f32.mrf.mxu0
      %v736 = vadd.f32 %v543, %v735
      %v737 = vpop.f32.mrf.mxu0
      %738 = vdwg.mxu0
      %v739 = vmul.f32 %v661, 0.2
      %v740 = vmul.f32 %v666, 0.2
      %v741 = vmul.f32 %v671, 0.2
      %v742 = vmul.f32 %v676, 0.2
      %v743 = vmul.f32 %v681, 0.2
      %v744 = vmul.f32 %v686, 0.2
      %v745 = vmul.f32 %v691, 0.2
      %v746 = vmul.f32 %v696, 0.2
      %v747 = vmul.f32 %v701, 0.2
      %v748 = vmul.f32 %v706, 0.2
      %v749 = vmul.f32 %v711, 0.2
      %v750 = vmul.f32 %v716, 0.2
      %v751 = vmul.f32 %v721, 0.2
      %v752 = vmul.f32 %v726, 0.2
      %v753 = vmul.f32 %v731, 0.2
      %v754 = vmul.f32 %v736, 0.2
      %v755 = vmax.f32 %v661, %v739
      %v756 = vmax.f32 %v666, %v740
      %v757 = vmax.f32 %v671, %v741
      %v758 = vmax.f32 %v676, %v742
      %v759 = vmax.f32 %v681, %v743
      %v760 = vmax.f32 %v686, %v744
      %v761 = vmax.f32 %v691, %v745
      %v762 = vmax.f32 %v696, %v746
      %v763 = vmax.f32 %v701, %v747
      %v764 = vmax.f32 %v706, %v748
      %v765 = vmax.f32 %v711, %v749
      %v766 = vmax.f32 %v716, %v750
      %v767 = vmax.f32 %v721, %v751
      %v768 = vmax.f32 %v726, %v752
      %v769 = vmax.f32 %v731, %v753
      %v770 = vmax.f32 %v736, %v754
      %v771 = vld [vmem:[%s5] sm:$0xff]
      %v772 = vld [vmem:[%s5 + $0x8] sm:$0xff]
      %v773 = vld [vmem:[%s5 + $0x10] sm:$0xff]
      %v774 = vld [vmem:[%s5 + $0x18] sm:$0xff]
      %v775 = vld [vmem:[%s5 + $0x20] sm:$0xff]
      %v776 = vld [vmem:[%s5 + $0x28] sm:$0xff]
      %v777 = vld [vmem:[%s5 + $0x30] sm:$0xff]
      %v778 = vld [vmem:[%s5 + $0x38] sm:$0xff]
      %v779 = vld [vmem:[%s5 + $0x40] sm:$0xff]
      %v780 = vld [vmem:[%s5 + $0x48] sm:$0xff]
      %v781 = vld [vmem:[%s5 + $0x50] sm:$0xff]
      %v782 = vld [vmem:[%s5 + $0x58] sm:$0xff]
      %v783 = vld [vmem:[%s5 + $0x60] sm:$0xf]
      %v784 = vld [vmem:[%s6] sm:$0x1]
      %v786 = vlaneseq
      %v787 = vshrl.u32 %v786, 7
      %v788 = vsub.s32 0, %v787
      %v789 = vrot.slane %v784, %v788
      %vm791 = vcmask 818176
      %v793 = vsel %vm791, %v755, 0
      %v796 = vsel %vm791, %v756, 0
      %v799 = vsel %vm791, %v757, 0
      %v802 = vsel %vm791, %v758, 0
      %v805 = vsel %vm791, %v759, 0
      %v808 = vsel %vm791, %v760, 0
      %v811 = vsel %vm791, %v761, 0
      %v814 = vsel %vm791, %v762, 0
      %v817 = vsel %vm791, %v763, 0
      %v820 = vsel %vm791, %v764, 0
      %v823 = vsel %vm791, %v765, 0
      %v826 = vsel %vm791, %v766, 0
      %v829 = vsel %vm791, %v767, 0
      %v832 = vsel %vm791, %v768, 0
      %v835 = vsel %vm791, %v769, 0
      %v838 = vsel %vm791, %v770, 0
      %vm840 = vcmask 1043456
      %v842 = vsel %vm840, %v783, 0
      %844 = vmatprep.subr.mxu0 0.0
      %845 = vmatpush1.msra.mxu0 0.0
      %846 = vmatprep.subr.mxu0 0.0
      %847 = vmatpush1.msra.mxu0 0.0
      %848 = vmatprep.subr.mxu0 0.0
      %849 = vmatpush1.msra.mxu0 0.0
      %850 = vmatprep.subr.mxu0 0.0
      %851 = vmatpush1.msra.mxu0 %v842
      %852 = vmatprep.subr.mxu0 0.0
      %853 = vmatpush1.msra.mxu0 %v782
      %854 = vmatprep.subr.mxu0 0.0
      %855 = vmatpush1.msra.mxu0 %v781
      %856 = vmatprep.subr.mxu0 0.0
      %857 = vmatpush1.msra.mxu0 %v780
      %858 = vmatprep.subr.mxu0 0.0
      %859 = vmatpush1.msra.mxu0 %v779
      %860 = vmatprep.subr.mxu0 0.0
      %861 = vmatpush1.msra.mxu0 %v778
      %862 = vmatprep.subr.mxu0 0.0
      %863 = vmatpush1.msra.mxu0 %v777
      %864 = vmatprep.subr.mxu0 0.0
      %865 = vmatpush1.msra.mxu0 %v776
      %866 = vmatprep.subr.mxu0 0.0
      %867 = vmatpush1.msra.mxu0 %v775
      %868 = vmatprep.subr.mxu0 0.0
      %869 = vmatpush1.msra.mxu0 %v774
      %870 = vmatprep.subr.mxu0 0.0
      %871 = vmatpush1.msra.mxu0 %v773
      %872 = vmatprep.subr.mxu0 0.0
      %873 = vmatpush1.msra.mxu0 %v772
      %874 = vmatprep.subr.mxu0 0.0
      %875 = vmatpush1.msra.mxu0 %v771
      %876 = vmatprep.subr.mxu0 0.0
      %877 = vmatpush2.msra.mxu0 0.0
      %878 = vmatprep.subr.mxu0 0.0
      %879 = vmatpush2.msra.mxu0 0.0
      %880 = vmatprep.subr.mxu0 0.0
      %881 = vmatpush2.msra.mxu0 0.0
      %882 = vmatprep.subr.mxu0 0.0
      %883 = vmatpush2.msra.mxu0 0.0
      %884 = vmatprep.subr.mxu0 0.0
      %885 = vmatpush2.msra.mxu0 0.0
      %886 = vmatprep.subr.mxu0 0.0
      %887 = vmatpush2.msra.mxu0 0.0
      %888 = vmatprep.subr.mxu0 0.0
      %889 = vmatpush2.msra.mxu0 0.0
      %890 = vmatprep.subr.mxu0 0.0
      %891 = vmatpush2.msra.mxu0 0.0
      %892 = vmatprep.subr.mxu0 0.0
      %893 = vmatpush2.msra.mxu0 0.0
      %894 = vmatprep.subr.mxu0 0.0
      %895 = vmatpush2.msra.mxu0 0.0
      %896 = vmatprep.subr.mxu0 0.0
      %897 = vmatpush2.msra.mxu0 0.0
      %898 = vmatprep.subr.mxu0 0.0
      %899 = vmatpush2.msra.mxu0 0.0
      %900 = vmatprep.subr.mxu0 0.0
      %901 = vmatpush2.msra.mxu0 0.0
      %902 = vmatprep.subr.mxu0 0.0
      %903 = vmatpush2.msra.mxu0 0.0
      %904 = vmatprep.subr.mxu0 0.0
      %905 = vmatpush2.msra.mxu0 0.0
      %906 = vmatprep.subr.mxu0 0.0
      %907 = vmatpush2.msra.mxu0 0.0
      %908 = vmatprep.mubr.f32.mxu0 0.0
      %909 = vmatmul.mubr.f32.gmra.mxu0 %v793
      %v910 = vpop.f32.mrf.mxu0
      %v911 = vadd.f32 %v789, %v910
      %v912 = vpop.f32.mrf.mxu0
      %913 = vmatprep.mubr.f32.mxu0 0.0
      %914 = vmatmul.mubr.f32.gmra.mxu0 %v796
      %v915 = vpop.f32.mrf.mxu0
      %v916 = vadd.f32 %v789, %v915
      %v917 = vpop.f32.mrf.mxu0
      %918 = vmatprep.mubr.f32.mxu0 0.0
      %919 = vmatmul.mubr.f32.gmra.mxu0 %v799
      %v920 = vpop.f32.mrf.mxu0
      %v921 = vadd.f32 %v789, %v920
      %v922 = vpop.f32.mrf.mxu0
      %923 = vmatprep.mubr.f32.mxu0 0.0
      %924 = vmatmul.mubr.f32.gmra.mxu0 %v802
      %v925 = vpop.f32.mrf.mxu0
      %v926 = vadd.f32 %v789, %v925
      %v927 = vpop.f32.mrf.mxu0
      %928 = vmatprep.mubr.f32.mxu0 0.0
      %929 = vmatmul.mubr.f32.gmra.mxu0 %v805
      %v930 = vpop.f32.mrf.mxu0
      %v931 = vadd.f32 %v789, %v930
      %v932 = vpop.f32.mrf.mxu0
      %933 = vmatprep.mubr.f32.mxu0 0.0
      %934 = vmatmul.mubr.f32.gmra.mxu0 %v808
      %v935 = vpop.f32.mrf.mxu0
      %v936 = vadd.f32 %v789, %v935
      %v937 = vpop.f32.mrf.mxu0
      %938 = vmatprep.mubr.f32.mxu0 0.0
      %939 = vmatmul.mubr.f32.gmra.mxu0 %v811
      %v940 = vpop.f32.mrf.mxu0
      %v941 = vadd.f32 %v789, %v940
      %v942 = vpop.f32.mrf.mxu0
      %943 = vmatprep.mubr.f32.mxu0 0.0
      %944 = vmatmul.mubr.f32.gmra.mxu0 %v814
      %v945 = vpop.f32.mrf.mxu0
      %v946 = vadd.f32 %v789, %v945
      %v947 = vpop.f32.mrf.mxu0
      %948 = vmatprep.mubr.f32.mxu0 0.0
      %949 = vmatmul.mubr.f32.gmra.mxu0 %v817
      %v950 = vpop.f32.mrf.mxu0
      %v951 = vadd.f32 %v789, %v950
      %v952 = vpop.f32.mrf.mxu0
      %953 = vmatprep.mubr.f32.mxu0 0.0
      %954 = vmatmul.mubr.f32.gmra.mxu0 %v820
      %v955 = vpop.f32.mrf.mxu0
      %v956 = vadd.f32 %v789, %v955
      %v957 = vpop.f32.mrf.mxu0
      %958 = vmatprep.mubr.f32.mxu0 0.0
      %959 = vmatmul.mubr.f32.gmra.mxu0 %v823
      %v960 = vpop.f32.mrf.mxu0
      %v961 = vadd.f32 %v789, %v960
      %v962 = vpop.f32.mrf.mxu0
      %963 = vmatprep.mubr.f32.mxu0 0.0
      %964 = vmatmul.mubr.f32.gmra.mxu0 %v826
      %v965 = vpop.f32.mrf.mxu0
      %v966 = vadd.f32 %v789, %v965
      %v967 = vpop.f32.mrf.mxu0
      %968 = vmatprep.mubr.f32.mxu0 0.0
      %969 = vmatmul.mubr.f32.gmra.mxu0 %v829
      %v970 = vpop.f32.mrf.mxu0
      %v971 = vadd.f32 %v789, %v970
      %v972 = vpop.f32.mrf.mxu0
      %973 = vmatprep.mubr.f32.mxu0 0.0
      %974 = vmatmul.mubr.f32.gmra.mxu0 %v832
      %v975 = vpop.f32.mrf.mxu0
      %v976 = vadd.f32 %v789, %v975
      %v977 = vpop.f32.mrf.mxu0
      %978 = vmatprep.mubr.f32.mxu0 0.0
      %979 = vmatmul.mubr.f32.gmra.mxu0 %v835
      %v980 = vpop.f32.mrf.mxu0
      %v981 = vadd.f32 %v789, %v980
      %v982 = vpop.f32.mrf.mxu0
      %983 = vmatprep.mubr.f32.mxu0 0.0
      %984 = vmatmul.mubr.f32.gmra.mxu0 %v838
      %v985 = vpop.f32.mrf.mxu0
      %v986 = vadd.f32 %v789, %v985
      %v987 = vpop.f32.mrf.mxu0
      %988 = vdwg.mxu0
      %v989 = vadd.f32 %v911, %v518
      %v990 = vadd.f32 %v916, %v519
      %v991 = vadd.f32 %v921, %v520
      %v992 = vadd.f32 %v926, %v521
      %v993 = vadd.f32 %v931, %v522
      %v994 = vadd.f32 %v936, %v523
      %v995 = vadd.f32 %v941, %v524
      %v996 = vadd.f32 %v946, %v525
      %v997 = vadd.f32 %v951, %v526
      %v998 = vadd.f32 %v956, %v527
      %v999 = vadd.f32 %v961, %v528
      %v1000 = vadd.f32 %v966, %v529
      %v1001 = vadd.f32 %v971, %v530
      %v1002 = vadd.f32 %v976, %v531
      %v1003 = vadd.f32 %v981, %v532
      %v1004 = vadd.f32 %v986, %v533
      %v1005 = vmul.f32 %v989, 0.2
      %v1006 = vmul.f32 %v990, 0.2
      %v1007 = vmul.f32 %v991, 0.2
      %v1008 = vmul.f32 %v992, 0.2
      %v1009 = vmul.f32 %v993, 0.2
      %v1010 = vmul.f32 %v994, 0.2
      %v1011 = vmul.f32 %v995, 0.2
      %v1012 = vmul.f32 %v996, 0.2
      %v1013 = vmul.f32 %v997, 0.2
      %v1014 = vmul.f32 %v998, 0.2
      %v1015 = vmul.f32 %v999, 0.2
      %v1016 = vmul.f32 %v1000, 0.2
      %v1017 = vmul.f32 %v1001, 0.2
      %v1018 = vmul.f32 %v1002, 0.2
      %v1019 = vmul.f32 %v1003, 0.2
      %v1020 = vmul.f32 %v1004, 0.2
      %v1021 = vmax.f32 %v989, %v1005
      %v1022 = vmax.f32 %v990, %v1006
      %v1023 = vmax.f32 %v991, %v1007
      %v1024 = vmax.f32 %v992, %v1008
      %v1025 = vmax.f32 %v993, %v1009
      %v1026 = vmax.f32 %v994, %v1010
      %v1027 = vmax.f32 %v995, %v1011
      %v1028 = vmax.f32 %v996, %v1012
      %v1029 = vmax.f32 %v997, %v1013
      %v1030 = vmax.f32 %v998, %v1014
      %v1031 = vmax.f32 %v999, %v1015
      %v1032 = vmax.f32 %v1000, %v1016
      %v1033 = vmax.f32 %v1001, %v1017
      %v1034 = vmax.f32 %v1002, %v1018
      %v1035 = vmax.f32 %v1003, %v1019
      %v1036 = vmax.f32 %v1004, %v1020
      %v1037 = vld [vmem:[%s7] sm:$0xff]
      %v1038 = vld [vmem:[%s7 + $0x8] sm:$0xff]
      %v1039 = vld [vmem:[%s7 + $0x10] sm:$0xff]
      %v1040 = vld [vmem:[%s7 + $0x18] sm:$0xff]
      %v1041 = vld [vmem:[%s8] sm:$0x1]
      %v1043 = vlaneseq
      %v1044 = vshrl.u32 %v1043, 7
      %v1045 = vsub.s32 0, %v1044
      %v1046 = vrot.slane %v1041, %v1045
      %v1049 = vsel %vm545, %v1021, 0
      %v1052 = vsel %vm545, %v1022, 0
      %v1055 = vsel %vm545, %v1023, 0
      %v1058 = vsel %vm545, %v1024, 0
      %v1061 = vsel %vm545, %v1025, 0
      %v1064 = vsel %vm545, %v1026, 0
      %v1067 = vsel %vm545, %v1027, 0
      %v1070 = vsel %vm545, %v1028, 0
      %v1073 = vsel %vm545, %v1029, 0
      %v1076 = vsel %vm545, %v1030, 0
      %v1079 = vsel %vm545, %v1031, 0
      %v1082 = vsel %vm545, %v1032, 0
      %v1085 = vsel %vm545, %v1033, 0
      %v1088 = vsel %vm545, %v1034, 0
      %v1091 = vsel %vm545, %v1035, 0
      %v1094 = vsel %vm545, %v1036, 0
      %1096 = vmatprep.subr.mxu0 0.0
      %1097 = vmatpush1.msra.mxu0 0.0
      %1098 = vmatprep.subr.mxu0 0.0
      %1099 = vmatpush1.msra.mxu0 0.0
      %1100 = vmatprep.subr.mxu0 0.0
      %1101 = vmatpush1.msra.mxu0 0.0
      %1102 = vmatprep.subr.mxu0 0.0
      %1103 = vmatpush1.msra.mxu0 0.0
      %1104 = vmatprep.subr.mxu0 0.0
      %1105 = vmatpush1.msra.mxu0 0.0
      %1106 = vmatprep.subr.mxu0 0.0
      %1107 = vmatpush1.msra.mxu0 0.0
      %1108 = vmatprep.subr.mxu0 0.0
      %1109 = vmatpush1.msra.mxu0 0.0
      %1110 = vmatprep.subr.mxu0 0.0
      %1111 = vmatpush1.msra.mxu0 0.0
      %1112 = vmatprep.subr.mxu0 0.0
      %1113 = vmatpush1.msra.mxu0 0.0
      %1114 = vmatprep.subr.mxu0 0.0
      %1115 = vmatpush1.msra.mxu0 0.0
      %1116 = vmatprep.subr.mxu0 0.0
      %1117 = vmatpush1.msra.mxu0 0.0
      %1118 = vmatprep.subr.mxu0 0.0
      %1119 = vmatpush1.msra.mxu0 0.0
      %1120 = vmatprep.subr.mxu0 0.0
      %1121 = vmatpush1.msra.mxu0 %v1040
      %1122 = vmatprep.subr.mxu0 0.0
      %1123 = vmatpush1.msra.mxu0 %v1039
      %1124 = vmatprep.subr.mxu0 0.0
      %1125 = vmatpush1.msra.mxu0 %v1038
      %1126 = vmatprep.subr.mxu0 0.0
      %1127 = vmatpush1.msra.mxu0 %v1037
      %1128 = vmatprep.subr.mxu0 0.0
      %1129 = vmatpush2.msra.mxu0 0.0
      %1130 = vmatprep.subr.mxu0 0.0
      %1131 = vmatpush2.msra.mxu0 0.0
      %1132 = vmatprep.subr.mxu0 0.0
      %1133 = vmatpush2.msra.mxu0 0.0
      %1134 = vmatprep.subr.mxu0 0.0
      %1135 = vmatpush2.msra.mxu0 0.0
      %1136 = vmatprep.subr.mxu0 0.0
      %1137 = vmatpush2.msra.mxu0 0.0
      %1138 = vmatprep.subr.mxu0 0.0
      %1139 = vmatpush2.msra.mxu0 0.0
      %1140 = vmatprep.subr.mxu0 0.0
      %1141 = vmatpush2.msra.mxu0 0.0
      %1142 = vmatprep.subr.mxu0 0.0
      %1143 = vmatpush2.msra.mxu0 0.0
      %1144 = vmatprep.subr.mxu0 0.0
      %1145 = vmatpush2.msra.mxu0 0.0
      %1146 = vmatprep.subr.mxu0 0.0
      %1147 = vmatpush2.msra.mxu0 0.0
      %1148 = vmatprep.subr.mxu0 0.0
      %1149 = vmatpush2.msra.mxu0 0.0
      %1150 = vmatprep.subr.mxu0 0.0
      %1151 = vmatpush2.msra.mxu0 0.0
      %1152 = vmatprep.subr.mxu0 0.0
      %1153 = vmatpush2.msra.mxu0 0.0
      %1154 = vmatprep.subr.mxu0 0.0
      %1155 = vmatpush2.msra.mxu0 0.0
      %1156 = vmatprep.subr.mxu0 0.0
      %1157 = vmatpush2.msra.mxu0 0.0
      %1158 = vmatprep.subr.mxu0 0.0
      %1159 = vmatpush2.msra.mxu0 0.0
      %1160 = vmatprep.mubr.f32.mxu0 0.0
      %1161 = vmatmul.mubr.f32.gmra.mxu0 %v1049
      %v1162 = vpop.f32.mrf.mxu0
      %v1163 = vadd.f32 %v1046, %v1162
      %v1164 = vpop.f32.mrf.mxu0
      %1165 = vmatprep.mubr.f32.mxu0 0.0
      %1166 = vmatmul.mubr.f32.gmra.mxu0 %v1052
      %v1167 = vpop.f32.mrf.mxu0
      %v1168 = vadd.f32 %v1046, %v1167
      %v1169 = vpop.f32.mrf.mxu0
      %1170 = vmatprep.mubr.f32.mxu0 0.0
      %1171 = vmatmul.mubr.f32.gmra.mxu0 %v1055
      %v1172 = vpop.f32.mrf.mxu0
      %v1173 = vadd.f32 %v1046, %v1172
      %v1174 = vpop.f32.mrf.mxu0
      %1175 = vmatprep.mubr.f32.mxu0 0.0
      %1176 = vmatmul.mubr.f32.gmra.mxu0 %v1058
      %v1177 = vpop.f32.mrf.mxu0
      %v1178 = vadd.f32 %v1046, %v1177
      %v1179 = vpop.f32.mrf.mxu0
      %1180 = vmatprep.mubr.f32.mxu0 0.0
      %1181 = vmatmul.mubr.f32.gmra.mxu0 %v1061
      %v1182 = vpop.f32.mrf.mxu0
      %v1183 = vadd.f32 %v1046, %v1182
      %v1184 = vpop.f32.mrf.mxu0
      %1185 = vmatprep.mubr.f32.mxu0 0.0
      %1186 = vmatmul.mubr.f32.gmra.mxu0 %v1064
      %v1187 = vpop.f32.mrf.mxu0
      %v1188 = vadd.f32 %v1046, %v1187
      %v1189 = vpop.f32.mrf.mxu0
      %1190 = vmatprep.mubr.f32.mxu0 0.0
      %1191 = vmatmul.mubr.f32.gmra.mxu0 %v1067
      %v1192 = vpop.f32.mrf.mxu0
      %v1193 = vadd.f32 %v1046, %v1192
      %v1194 = vpop.f32.mrf.mxu0
      %1195 = vmatprep.mubr.f32.mxu0 0.0
      %1196 = vmatmul.mubr.f32.gmra.mxu0 %v1070
      %v1197 = vpop.f32.mrf.mxu0
      %v1198 = vadd.f32 %v1046, %v1197
      %v1199 = vpop.f32.mrf.mxu0
      %1200 = vmatprep.mubr.f32.mxu0 0.0
      %1201 = vmatmul.mubr.f32.gmra.mxu0 %v1073
      %v1202 = vpop.f32.mrf.mxu0
      %v1203 = vadd.f32 %v1046, %v1202
      %v1204 = vpop.f32.mrf.mxu0
      %1205 = vmatprep.mubr.f32.mxu0 0.0
      %1206 = vmatmul.mubr.f32.gmra.mxu0 %v1076
      %v1207 = vpop.f32.mrf.mxu0
      %v1208 = vadd.f32 %v1046, %v1207
      %v1209 = vpop.f32.mrf.mxu0
      %1210 = vmatprep.mubr.f32.mxu0 0.0
      %1211 = vmatmul.mubr.f32.gmra.mxu0 %v1079
      %v1212 = vpop.f32.mrf.mxu0
      %v1213 = vadd.f32 %v1046, %v1212
      %v1214 = vpop.f32.mrf.mxu0
      %1215 = vmatprep.mubr.f32.mxu0 0.0
      %1216 = vmatmul.mubr.f32.gmra.mxu0 %v1082
      %v1217 = vpop.f32.mrf.mxu0
      %v1218 = vadd.f32 %v1046, %v1217
      %v1219 = vpop.f32.mrf.mxu0
      %1220 = vmatprep.mubr.f32.mxu0 0.0
      %1221 = vmatmul.mubr.f32.gmra.mxu0 %v1085
      %v1222 = vpop.f32.mrf.mxu0
      %v1223 = vadd.f32 %v1046, %v1222
      %v1224 = vpop.f32.mrf.mxu0
      %1225 = vmatprep.mubr.f32.mxu0 0.0
      %1226 = vmatmul.mubr.f32.gmra.mxu0 %v1088
      %v1227 = vpop.f32.mrf.mxu0
      %v1228 = vadd.f32 %v1046, %v1227
      %v1229 = vpop.f32.mrf.mxu0
      %1230 = vmatprep.mubr.f32.mxu0 0.0
      %1231 = vmatmul.mubr.f32.gmra.mxu0 %v1091
      %v1232 = vpop.f32.mrf.mxu0
      %v1233 = vadd.f32 %v1046, %v1232
      %v1234 = vpop.f32.mrf.mxu0
      %1235 = vmatprep.mubr.f32.mxu0 0.0
      %1236 = vmatmul.mubr.f32.gmra.mxu0 %v1094
      %v1237 = vpop.f32.mrf.mxu0
      %v1238 = vadd.f32 %v1046, %v1237
      %v1239 = vpop.f32.mrf.mxu0
      %1240 = vdwg.mxu0
      %v1241 = vmul.f32 %v1163, 0.2
      %v1242 = vmul.f32 %v1168, 0.2
      %v1243 = vmul.f32 %v1173, 0.2
      %v1244 = vmul.f32 %v1178, 0.2
      %v1245 = vmul.f32 %v1183, 0.2
      %v1246 = vmul.f32 %v1188, 0.2
      %v1247 = vmul.f32 %v1193, 0.2
      %v1248 = vmul.f32 %v1198, 0.2
      %v1249 = vmul.f32 %v1203, 0.2
      %v1250 = vmul.f32 %v1208, 0.2
      %v1251 = vmul.f32 %v1213, 0.2
      %v1252 = vmul.f32 %v1218, 0.2
      %v1253 = vmul.f32 %v1223, 0.2
      %v1254 = vmul.f32 %v1228, 0.2
      %v1255 = vmul.f32 %v1233, 0.2
      %v1256 = vmul.f32 %v1238, 0.2
      %v1257 = vmax.f32 %v1163, %v1241
      %v1258 = vmax.f32 %v1168, %v1242
      %v1259 = vmax.f32 %v1173, %v1243
      %v1260 = vmax.f32 %v1178, %v1244
      %v1261 = vmax.f32 %v1183, %v1245
      %v1262 = vmax.f32 %v1188, %v1246
      %v1263 = vmax.f32 %v1193, %v1247
      %v1264 = vmax.f32 %v1198, %v1248
      %v1265 = vmax.f32 %v1203, %v1249
      %v1266 = vmax.f32 %v1208, %v1250
      %v1267 = vmax.f32 %v1213, %v1251
      %v1268 = vmax.f32 %v1218, %v1252
      %v1269 = vmax.f32 %v1223, %v1253
      %v1270 = vmax.f32 %v1228, %v1254
      %v1271 = vmax.f32 %v1233, %v1255
      %v1272 = vmax.f32 %v1238, %v1256
      %v1273 = vld [vmem:[%s9] sm:$0xff]
      %v1274 = vld [vmem:[%s9 + $0x8] sm:$0xff]
      %v1275 = vld [vmem:[%s9 + $0x10] sm:$0xff]
      %v1276 = vld [vmem:[%s9 + $0x18] sm:$0xff]
      %v1277 = vld [vmem:[%s9 + $0x20] sm:$0xff]
      %v1278 = vld [vmem:[%s9 + $0x28] sm:$0xff]
      %v1279 = vld [vmem:[%s9 + $0x30] sm:$0x3]
      %v1280 = vld [vmem:[%s10] sm:$0x1]
      %v1282 = vlaneseq
      %v1283 = vshrl.u32 %v1282, 7
      %v1284 = vsub.s32 0, %v1283
      %v1285 = vrot.slane %v1280, %v1284
      %vm1287 = vcmask 408576
      %v1289 = vsel %vm1287, %v1257, 0
      %v1292 = vsel %vm1287, %v1258, 0
      %v1295 = vsel %vm1287, %v1259, 0
      %v1298 = vsel %vm1287, %v1260, 0
      %v1301 = vsel %vm1287, %v1261, 0
      %v1304 = vsel %vm1287, %v1262, 0
      %v1307 = vsel %vm1287, %v1263, 0
      %v1310 = vsel %vm1287, %v1264, 0
      %v1313 = vsel %vm1287, %v1265, 0
      %v1316 = vsel %vm1287, %v1266, 0
      %v1319 = vsel %vm1287, %v1267, 0
      %v1322 = vsel %vm1287, %v1268, 0
      %v1325 = vsel %vm1287, %v1269, 0
      %v1328 = vsel %vm1287, %v1270, 0
      %v1331 = vsel %vm1287, %v1271, 0
      %v1334 = vsel %vm1287, %v1272, 0
      %vm1336 = vcmask 1041408
      %v1338 = vsel %vm1336, %v1279, 0
      %1340 = vmatprep.subr.mxu0 0.0
      %1341 = vmatpush1.msra.mxu0 0.0
      %1342 = vmatprep.subr.mxu0 0.0
      %1343 = vmatpush1.msra.mxu0 0.0
      %1344 = vmatprep.subr.mxu0 0.0
      %1345 = vmatpush1.msra.mxu0 0.0
      %1346 = vmatprep.subr.mxu0 0.0
      %1347 = vmatpush1.msra.mxu0 0.0
      %1348 = vmatprep.subr.mxu0 0.0
      %1349 = vmatpush1.msra.mxu0 0.0
      %1350 = vmatprep.subr.mxu0 0.0
      %1351 = vmatpush1.msra.mxu0 0.0
      %1352 = vmatprep.subr.mxu0 0.0
      %1353 = vmatpush1.msra.mxu0 0.0
      %1354 = vmatprep.subr.mxu0 0.0
      %1355 = vmatpush1.msra.mxu0 0.0
      %1356 = vmatprep.subr.mxu0 0.0
      %1357 = vmatpush1.msra.mxu0 0.0
      %1358 = vmatprep.subr.mxu0 0.0
      %1359 = vmatpush1.msra.mxu0 %v1338
      %1360 = vmatprep.subr.mxu0 0.0
      %1361 = vmatpush1.msra.mxu0 %v1278
      %1362 = vmatprep.subr.mxu0 0.0
      %1363 = vmatpush1.msra.mxu0 %v1277
      %1364 = vmatprep.subr.mxu0 0.0
      %1365 = vmatpush1.msra.mxu0 %v1276
      %1366 = vmatprep.subr.mxu0 0.0
      %1367 = vmatpush1.msra.mxu0 %v1275
      %1368 = vmatprep.subr.mxu0 0.0
      %1369 = vmatpush1.msra.mxu0 %v1274
      %1370 = vmatprep.subr.mxu0 0.0
      %1371 = vmatpush1.msra.mxu0 %v1273
      %1372 = vmatprep.subr.mxu0 0.0
      %1373 = vmatpush2.msra.mxu0 0.0
      %1374 = vmatprep.subr.mxu0 0.0
      %1375 = vmatpush2.msra.mxu0 0.0
      %1376 = vmatprep.subr.mxu0 0.0
      %1377 = vmatpush2.msra.mxu0 0.0
      %1378 = vmatprep.subr.mxu0 0.0
      %1379 = vmatpush2.msra.mxu0 0.0
      %1380 = vmatprep.subr.mxu0 0.0
      %1381 = vmatpush2.msra.mxu0 0.0
      %1382 = vmatprep.subr.mxu0 0.0
      %1383 = vmatpush2.msra.mxu0 0.0
      %1384 = vmatprep.subr.mxu0 0.0
      %1385 = vmatpush2.msra.mxu0 0.0
      %1386 = vmatprep.subr.mxu0 0.0
      %1387 = vmatpush2.msra.mxu0 0.0
      %1388 = vmatprep.subr.mxu0 0.0
      %1389 = vmatpush2.msra.mxu0 0.0
      %1390 = vmatprep.subr.mxu0 0.0
      %1391 = vmatpush2.msra.mxu0 0.0
      %1392 = vmatprep.subr.mxu0 0.0
      %1393 = vmatpush2.msra.mxu0 0.0
      %1394 = vmatprep.subr.mxu0 0.0
      %1395 = vmatpush2.msra.mxu0 0.0
      %1396 = vmatprep.subr.mxu0 0.0
      %1397 = vmatpush2.msra.mxu0 0.0
      %1398 = vmatprep.subr.mxu0 0.0
      %1399 = vmatpush2.msra.mxu0 0.0
      %1400 = vmatprep.subr.mxu0 0.0
      %1401 = vmatpush2.msra.mxu0 0.0
      %1402 = vmatprep.subr.mxu0 0.0
      %1403 = vmatpush2.msra.mxu0 0.0
      %1404 = vmatprep.mubr.f32.mxu0 0.0
      %1405 = vmatmul.mubr.f32.gmra.mxu0 %v1289
      %v1406 = vpop.f32.mrf.mxu0
      %v1407 = vadd.f32 %v1285, %v1406
      %v1408 = vpop.f32.mrf.mxu0
      %1409 = vmatprep.mubr.f32.mxu0 0.0
      %1410 = vmatmul.mubr.f32.gmra.mxu0 %v1292
      %v1411 = vpop.f32.mrf.mxu0
      %v1412 = vadd.f32 %v1285, %v1411
      %v1413 = vpop.f32.mrf.mxu0
      %1414 = vmatprep.mubr.f32.mxu0 0.0
      %1415 = vmatmul.mubr.f32.gmra.mxu0 %v1295
      %v1416 = vpop.f32.mrf.mxu0
      %v1417 = vadd.f32 %v1285, %v1416
      %v1418 = vpop.f32.mrf.mxu0
      %1419 = vmatprep.mubr.f32.mxu0 0.0
      %1420 = vmatmul.mubr.f32.gmra.mxu0 %v1298
      %v1421 = vpop.f32.mrf.mxu0
      %v1422 = vadd.f32 %v1285, %v1421
      %v1423 = vpop.f32.mrf.mxu0
      %1424 = vmatprep.mubr.f32.mxu0 0.0
      %1425 = vmatmul.mubr.f32.gmra.mxu0 %v1301
      %v1426 = vpop.f32.mrf.mxu0
      %v1427 = vadd.f32 %v1285, %v1426
      %v1428 = vpop.f32.mrf.mxu0
      %1429 = vmatprep.mubr.f32.mxu0 0.0
      %1430 = vmatmul.mubr.f32.gmra.mxu0 %v1304
      %v1431 = vpop.f32.mrf.mxu0
      %v1432 = vadd.f32 %v1285, %v1431
      %v1433 = vpop.f32.mrf.mxu0
      %1434 = vmatprep.mubr.f32.mxu0 0.0
      %1435 = vmatmul.mubr.f32.gmra.mxu0 %v1307
      %v1436 = vpop.f32.mrf.mxu0
      %v1437 = vadd.f32 %v1285, %v1436
      %v1438 = vpop.f32.mrf.mxu0
      %1439 = vmatprep.mubr.f32.mxu0 0.0
      %1440 = vmatmul.mubr.f32.gmra.mxu0 %v1310
      %v1441 = vpop.f32.mrf.mxu0
      %v1442 = vadd.f32 %v1285, %v1441
      %v1443 = vpop.f32.mrf.mxu0
      %1444 = vmatprep.mubr.f32.mxu0 0.0
      %1445 = vmatmul.mubr.f32.gmra.mxu0 %v1313
      %v1446 = vpop.f32.mrf.mxu0
      %v1447 = vadd.f32 %v1285, %v1446
      %v1448 = vpop.f32.mrf.mxu0
      %1449 = vmatprep.mubr.f32.mxu0 0.0
      %1450 = vmatmul.mubr.f32.gmra.mxu0 %v1316
      %v1451 = vpop.f32.mrf.mxu0
      %v1452 = vadd.f32 %v1285, %v1451
      %v1453 = vpop.f32.mrf.mxu0
      %1454 = vmatprep.mubr.f32.mxu0 0.0
      %1455 = vmatmul.mubr.f32.gmra.mxu0 %v1319
      %v1456 = vpop.f32.mrf.mxu0
      %v1457 = vadd.f32 %v1285, %v1456
      %v1458 = vpop.f32.mrf.mxu0
      %1459 = vmatprep.mubr.f32.mxu0 0.0
      %1460 = vmatmul.mubr.f32.gmra.mxu0 %v1322
      %v1461 = vpop.f32.mrf.mxu0
      %v1462 = vadd.f32 %v1285, %v1461
      %v1463 = vpop.f32.mrf.mxu0
      %1464 = vmatprep.mubr.f32.mxu0 0.0
      %1465 = vmatmul.mubr.f32.gmra.mxu0 %v1325
      %v1466 = vpop.f32.mrf.mxu0
      %v1467 = vadd.f32 %v1285, %v1466
      %v1468 = vpop.f32.mrf.mxu0
      %1469 = vmatprep.mubr.f32.mxu0 0.0
      %1470 = vmatmul.mubr.f32.gmra.mxu0 %v1328
      %v1471 = vpop.f32.mrf.mxu0
      %v1472 = vadd.f32 %v1285, %v1471
      %v1473 = vpop.f32.mrf.mxu0
      %1474 = vmatprep.mubr.f32.mxu0 0.0
      %1475 = vmatmul.mubr.f32.gmra.mxu0 %v1331
      %v1476 = vpop.f32.mrf.mxu0
      %v1477 = vadd.f32 %v1285, %v1476
      %v1478 = vpop.f32.mrf.mxu0
      %1479 = vmatprep.mubr.f32.mxu0 0.0
      %1480 = vmatmul.mubr.f32.gmra.mxu0 %v1334
      %v1481 = vpop.f32.mrf.mxu0
      %v1482 = vadd.f32 %v1285, %v1481
      %v1483 = vpop.f32.mrf.mxu0
      %1484 = vdwg.mxu0
      %v1485 = vmul.f32 %v1407, 0.2
      %v1486 = vmul.f32 %v1412, 0.2
      %v1487 = vmul.f32 %v1417, 0.2
      %v1488 = vmul.f32 %v1422, 0.2
      %v1489 = vmul.f32 %v1427, 0.2
      %v1490 = vmul.f32 %v1432, 0.2
      %v1491 = vmul.f32 %v1437, 0.2
      %v1492 = vmul.f32 %v1442, 0.2
      %v1493 = vmul.f32 %v1447, 0.2
      %v1494 = vmul.f32 %v1452, 0.2
      %v1495 = vmul.f32 %v1457, 0.2
      %v1496 = vmul.f32 %v1462, 0.2
      %v1497 = vmul.f32 %v1467, 0.2
      %v1498 = vmul.f32 %v1472, 0.2
      %v1499 = vmul.f32 %v1477, 0.2
      %v1500 = vmul.f32 %v1482, 0.2
      %v1501 = vmax.f32 %v1407, %v1485
      %v1502 = vmax.f32 %v1412, %v1486
      %v1503 = vmax.f32 %v1417, %v1487
      %v1504 = vmax.f32 %v1422, %v1488
      %v1505 = vmax.f32 %v1427, %v1489
      %v1506 = vmax.f32 %v1432, %v1490
      %v1507 = vmax.f32 %v1437, %v1491
      %v1508 = vmax.f32 %v1442, %v1492
      %v1509 = vmax.f32 %v1447, %v1493
      %v1510 = vmax.f32 %v1452, %v1494
      %v1511 = vmax.f32 %v1457, %v1495
      %v1512 = vmax.f32 %v1462, %v1496
      %v1513 = vmax.f32 %v1467, %v1497
      %v1514 = vmax.f32 %v1472, %v1498
      %v1515 = vmax.f32 %v1477, %v1499
      %v1516 = vmax.f32 %v1482, %v1500
      %v1517 = vld [vmem:[%s11] sm:$0xff]
      %vm1518 = vcmask 130048
      %v1520 = vsel %vm1518, %v1517, 0
      %v1523 = vsel %vm1518, %v1501, 0
      %v1526 = vsel %vm1518, %v1502, 0
      %v1529 = vsel %vm1518, %v1503, 0
      %v1532 = vsel %vm1518, %v1504, 0
      %v1535 = vsel %vm1518, %v1505, 0
      %v1538 = vsel %vm1518, %v1506, 0
      %v1541 = vsel %vm1518, %v1507, 0
      %v1544 = vsel %vm1518, %v1508, 0
      %v1547 = vsel %vm1518, %v1509, 0
      %v1550 = vsel %vm1518, %v1510, 0
      %v1553 = vsel %vm1518, %v1511, 0
      %v1556 = vsel %vm1518, %v1512, 0
      %v1559 = vsel %vm1518, %v1513, 0
      %v1562 = vsel %vm1518, %v1514, 0
      %v1565 = vsel %vm1518, %v1515, 0
      %v1568 = vsel %vm1518, %v1516, 0
      %1570 = vmatprep.subr.mxu0 0.0
      %1571 = vmatpush1.xpose.msra.mxu0 %v1568
      %1572 = vmatprep.subr.mxu0 0.0
      %1573 = vmatpush1.xpose.msra.mxu0 %v1565
      %1574 = vmatprep.subr.mxu0 0.0
      %1575 = vmatpush1.xpose.msra.mxu0 %v1562
      %1576 = vmatprep.subr.mxu0 0.0
      %1577 = vmatpush1.xpose.msra.mxu0 %v1559
      %1578 = vmatprep.subr.mxu0 0.0
      %1579 = vmatpush1.xpose.msra.mxu0 %v1556
      %1580 = vmatprep.subr.mxu0 0.0
      %1581 = vmatpush1.xpose.msra.mxu0 %v1553
      %1582 = vmatprep.subr.mxu0 0.0
      %1583 = vmatpush1.xpose.msra.mxu0 %v1550
      %1584 = vmatprep.subr.mxu0 0.0
      %1585 = vmatpush1.xpose.msra.mxu0 %v1547
      %1586 = vmatprep.subr.mxu0 0.0
      %1587 = vmatpush1.xpose.msra.mxu0 %v1544
      %1588 = vmatprep.subr.mxu0 0.0
      %1589 = vmatpush1.xpose.msra.mxu0 %v1541
      %1590 = vmatprep.subr.mxu0 0.0
      %1591 = vmatpush1.xpose.msra.mxu0 %v1538
      %1592 = vmatprep.subr.mxu0 0.0
      %1593 = vmatpush1.xpose.msra.mxu0 %v1535
      %1594 = vmatprep.subr.mxu0 0.0
      %1595 = vmatpush1.xpose.msra.mxu0 %v1532
      %1596 = vmatprep.subr.mxu0 0.0
      %1597 = vmatpush1.xpose.msra.mxu0 %v1529
      %1598 = vmatprep.subr.mxu0 0.0
      %1599 = vmatpush1.xpose.msra.mxu0 %v1526
      %1600 = vmatprep.subr.mxu0 0.0
      %1601 = vmatpush1.xpose.msra.mxu0 %v1523
      %1602 = vmatprep.subr.mxu0 0.0
      %1603 = vmatpush2.xpose.msra.mxu0 0.0
      %1604 = vmatprep.subr.mxu0 0.0
      %1605 = vmatpush2.xpose.msra.mxu0 0.0
      %1606 = vmatprep.subr.mxu0 0.0
      %1607 = vmatpush2.xpose.msra.mxu0 0.0
      %1608 = vmatprep.subr.mxu0 0.0
      %1609 = vmatpush2.xpose.msra.mxu0 0.0
      %1610 = vmatprep.subr.mxu0 0.0
      %1611 = vmatpush2.xpose.msra.mxu0 0.0
      %1612 = vmatprep.subr.mxu0 0.0
      %1613 = vmatpush2.xpose.msra.mxu0 0.0
      %1614 = vmatprep.subr.mxu0 0.0
      %1615 = vmatpush2.xpose.msra.mxu0 0.0
      %1616 = vmatprep.subr.mxu0 0.0
      %1617 = vmatpush2.xpose.msra.mxu0 0.0
      %1618 = vmatprep.subr.mxu0 0.0
      %1619 = vmatpush2.xpose.msra.mxu0 0.0
      %1620 = vmatprep.subr.mxu0 0.0
      %1621 = vmatpush2.xpose.msra.mxu0 0.0
      %1622 = vmatprep.subr.mxu0 0.0
      %1623 = vmatpush2.xpose.msra.mxu0 0.0
      %1624 = vmatprep.subr.mxu0 0.0
      %1625 = vmatpush2.xpose.msra.mxu0 0.0
      %1626 = vmatprep.subr.mxu0 0.0
      %1627 = vmatpush2.xpose.msra.mxu0 0.0
      %1628 = vmatprep.subr.mxu0 0.0
      %1629 = vmatpush2.xpose.msra.mxu0 0.0
      %1630 = vmatprep.subr.mxu0 0.0
      %1631 = vmatpush2.xpose.msra.mxu0 0.0
      %1632 = vmatprep.subr.mxu0 0.0
      %1633 = vmatpush2.xpose.msra.mxu0 0.0
      %1634 = vmatprep.mubr.f32.mxu0 0.0
      %1635 = vmatmul.mubr.f32.gmra.mxu0 %v1520
      %v1636 = vpop.f32.mrf.mxu0
      %v1637 = vadd.f32 0.0, %v1636
      %v1638 = vpop.f32.mrf.mxu0
      %1639 = vdwg.mxu0
      %s1640 = sld [smem:[#allocation2]]
      %v1641 = vstv %s1640
      %v1642 = vadd.f32 %v1637, %v1641
      %v1643 = vxor.u32 %v1642, 2147483648
      %v1644 = vmul.f32 %v1643, 1.442695
      %v1645 = vpow.pop %v1644
      %v1646 = vadd.f32 %v1645, 1.0
      %v1647 = vrcp.pop %v1646
      %v1648 = vmul.f32 1.0, %v1647
      %1649 = vst [vmem:[%s439] sm:$0x1] %v1648
      %p1650 = scmp.lt.s32.totalorder %s25, 1
      %s1651 = scalar_select %p1650, %s25, 1
      %s1652 = scalar_lea.vmem %s13, %s1651
      // Predicated region
      $region73: #{discriminator_forward.1} parent=71 // pred_check
        %p1653 = pneg %p321
      $region74: #{discriminator_forward.1} parent=71 // pred_check_branch
        %1655 = sbr.rel (%p1653) target = $region76
      $region75: #{discriminator_forward.1} parent=71 // pred_region
        _
      $region76: #{discriminator_forward.1} parent=71 // pred_fallthru
        _
    $region72: #{discriminator_forward.1} parent=5 // pred_fallthru
      _
    %p1656 = scmp.le.s32.totalorder 2, %s20
    // Predicated region
    $region77: #{discriminator_forward.1} parent=5 // pred_check
      %p1657 = pneg %p1656
    $region78: #{discriminator_forward.1} parent=5 // pred_check_branch
      %1659 = sbr.rel (%p1657) target = $region80
    $region79: #{discriminator_forward.1} parent=5 // pred_region
      %s1660 = ssub.s32 %s20, 2
      // Predicated region
      $region81: #{discriminator_forward.1} parent=79 // pred_check
        %p1661 = pneg %p327
      $region82: #{discriminator_forward.1} parent=79 // pred_check_branch
        %1663 = sbr.rel (%p1661) target = $region84
      $region83: #{discriminator_forward.1} parent=79 // pred_region
        %p1664 = scmp.lt.s32.totalorder %s26, 1
        %s1665 = scalar_select %p1664, %s26, 1
        %s1666 = scalar_lea.vmem %s13, %s1665
      $region84: #{discriminator_forward.1} parent=79 // pred_fallthru
        _
    $region80: #{discriminator_forward.1} parent=5 // pred_fallthru
      _
  $region6: #{discriminator_forward.1} parent=0 // loop_footer
    %s24 = sadd.s32 1, %s20
  $region7: #{discriminator_forward.1} parent=0 // loop_footer_branch
    %19 = sbr.rel target = $region3
  $region8: #{discriminator_forward.1} parent=0 // loop_exit
    _

</llo_original>
